<compile_context>
chip_gen: v7x
topology: tpu7x:2x2x1
jax: 0.10.0
libtpu: 0.0.40
codegen_flags: <defaults>
</compile_context>

<pallas_src>
import numpy as np
import jax
import jax.numpy as jnp
from jax.experimental import pallas as pl
from jax.experimental.pallas import tpu as pltpu

# ----- spline / module constants (nflows defaults, tails='linear') -----
NUM_BINS = 8
TAIL_BOUND = 1.0
MIN_BIN_WIDTH = 1e-3
MIN_BIN_HEIGHT = 1e-3
MIN_DERIVATIVE = 1e-3
DERIV_CONST = float(np.log(np.exp(1.0 - MIN_DERIVATIVE) - 1.0))
SEARCH_EPS = 1e-6
OUT_PAD = 128  # lane-dense output slab width


def _softplus(x):
    # matches torch.nn.functional.softplus (threshold=20)
    return jnp.where(x > 20.0, x, jnp.log1p(jnp.exp(jnp.minimum(x, 20.0))))


def coupled_rqs_kernel(z_ref, ctx_ref,
                       pef_ref, w1s_ref, w1c_ref, w1x_ref, b1_ref,
                       w2w_ref, b2w_ref, w2h_ref, b2h_ref, w2d_ref, b2d_ref,
                       selt_ref, cum_ref, sum_ref, shift_ref, rep_ref, red_ref,
                       last_ref, pid_ref, pt_ref, plad_ref,
                       out_ref):
    f32 = jnp.float32
    k = NUM_BINS
    tb = TAIL_BOUND
    dotf = lambda a, b: jnp.dot(a, b, preferred_element_type=jnp.float32)

    z = z_ref[...]        # (TN, D)
    ctx = ctx_ref[...]    # (TN, C)

    # ---- fused positional encoding + 2-layer ReLU MLP (transform net) ----
    # arg[:, f*I + i] = z[:, identity_feature[i]] * freq[f]  (one tiny matmul)
    arg = dotf(z, pef_ref[...])                               # (TN, F*I)
    h = (dotf(jnp.sin(arg), w1s_ref[...])
         + dotf(jnp.cos(arg), w1c_ref[...])
         + dotf(ctx, w1x_ref[...])
         + b1_ref[...])
    h = jnp.maximum(h, 0.0)
    uw = dotf(h, w2w_ref[...]) + b2w_ref[...]                 # (TN, T*K)     widths logits
    uh = dotf(h, w2h_ref[...]) + b2h_ref[...]                 # (TN, T*K)     heights logits
    ud = dotf(h, w2d_ref[...]) + b2d_ref[...]                 # (TN, T*(K+1)) padded deriv logits

    # ---- transform split / linear tails ----
    x = dotf(z, selt_ref[...])                                # (TN, T)
    inside = jnp.logical_and(x >= -tb, x <= tb).astype(f32)
    xc = jnp.clip(x, -tb, tb)

    islast = last_ref[...]                                    # (1, T*(K+1)) 0/1 at j==K
    notlast = 1.0 - islast
    sum_mat = sum_ref[...]
    cum_mat = cum_ref[...]
    shift = shift_ref[...]

    # ---- per-channel softmax (global row max == per-channel constant shift) ----
    ew = jnp.exp(uw - jnp.max(uw, axis=-1, keepdims=True))
    wn = ew / dotf(ew, sum_mat)                               # block-sum broadcast via matmul
    wa = MIN_BIN_WIDTH + (1.0 - MIN_BIN_WIDTH * k) * wn
    cumw = 2.0 * tb * dotf(wa, cum_mat) - tb                  # per-channel exclusive cumsum
    cumw = cumw * notlast + tb * islast                       # force right endpoint == +B

    eh = jnp.exp(uh - jnp.max(uh, axis=-1, keepdims=True))
    hn = eh / dotf(eh, sum_mat)
    ha = MIN_BIN_HEIGHT + (1.0 - MIN_BIN_HEIGHT * k) * hn
    cumh = 2.0 * tb * dotf(ha, cum_mat) - tb
    cumh = cumh * notlast + tb * islast

    derivs = MIN_DERIVATIVE + _softplus(ud)                   # (TN, T*(K+1))

    # "value at bin j+1, laid out at lane j" via a constant shift matrix
    cumw_n = dotf(cumw, shift)
    cumh_n = dotf(cumh, shift)
    der_n = dotf(derivs, shift)

    # ---- searchsorted over cumheights (inverse spline) ----
    xcr = dotf(xc, rep_ref[...])                              # xc broadcast over each channel block
    ge = (xcr >= (cumh + SEARCH_EPS * islast)).astype(f32)    # monotone 1..1 0..0 per channel
    sel = (ge * (1.0 - dotf(ge, shift))) > 0.5                # one-hot at the selected bin lane

    # ---- per-lane inverse rational-quadratic spline (lane j == candidate bin j) ----
    in_w = cumw_n - cumw
    in_h = cumh_n - cumh
    in_delta = in_h / in_w
    dy = xcr - cumh
    s = derivs + der_n - 2.0 * in_delta
    a = dy * s + in_h * (in_delta - derivs)
    b = in_h * derivs - dy * s
    c = -in_delta * dy
    disc = jnp.maximum(b * b - 4.0 * a * c, 0.0)
    root = (2.0 * c) / (-b - jnp.sqrt(disc))
    y_lane = root * in_w + cumw
    th = root * (1.0 - root)
    denom = in_delta + s * th
    dnum = (in_delta * in_delta) * (der_n * root * root + 2.0 * in_delta * th
                                    + derivs * (1.0 - root) * (1.0 - root))
    lad_lane = jnp.log((denom * denom) / dnum)                # == -(log(dnum) - 2*log(denom))

    # ---- exactly two masked selected-bin reductions (tiny matmuls) ----
    red = red_ref[...]                                        # (T*(K+1), T) block column-sum
    y_g = dotf(jnp.where(sel, y_lane, 0.0), red)              # (TN, T)
    lad_g = dotf(jnp.where(sel, lad_lane, 0.0), red)          # (TN, T)

    y_fin = inside * y_g + (1.0 - inside) * x                 # identity outside the tails
    lad_fin = inside * lad_g

    # ---- lane-dense output slab: cols [0:D) outputs, col D logabsdet, rest 0 ----
    out_ref[...] = (dotf(z, pid_ref[...])                     # identity columns pass through
                    + dotf(y_fin, pt_ref[...])                # transformed columns
                    + dotf(lad_fin, plad_ref[...]))           # sum-except-batch logabsdet col


class CoupledRQSplinePallas:
    """CoupledRQSpline.forward == PiecewiseRQCoupling.inverse (inverse RQ spline)."""

    def __init__(self, num_input_channels, num_bins=NUM_BINS, tail_bound=TAIL_BOUND,
                 reverse_mask=False, context_features=8, encode=4, hidden=32,
                 tile_rows=1024, key=jax.random.PRNGKey(42)):
        assert num_bins == NUM_BINS and tail_bound == TAIL_BOUND
        k = NUM_BINS
        mult = 3 * k - 1  # tails == 'linear'
        self.encode = encode
        self.tile_rows = int(tile_rows)
        self.num_features = num_input_channels

        # create_alternating_binary_mask(D, even=reverse_mask)
        start = 0 if reverse_mask else 1
        mask = np.zeros(num_input_channels, np.int32)
        mask[start::2] = 1
        idx = np.arange(num_input_channels)
        self.identity_features = idx[mask <= 0]
        self.transform_features = idx[mask > 0]
        I = self.num_identity = len(self.identity_features)
        T = self.num_transform = len(self.transform_features)
        D, C, F, H = num_input_channels, context_features, encode, hidden
        WK, WK1, FI = T * k, T * (k + 1), F * I
        assert D + 1 <= OUT_PAD

        # TODO(synk): transform_net is externally supplied (transform_net_create_fn)
        # in the original module; surrogate here = 2-layer ReLU MLP.
        in_dim = 2 * F * I + C
        out_dim = T * mult
        k1, k2 = jax.random.split(key)
        w1 = np.asarray(jax.random.normal(k1, (in_dim, H), jnp.float32)) / np.sqrt(in_dim)
        w2 = np.asarray(jax.random.normal(k2, (H, out_dim), jnp.float32)) / np.sqrt(H)
        b1 = np.zeros((1, H), np.float32)
        b2 = np.zeros((1, out_dim), np.float32)
        self.w1, self.b1 = jnp.asarray(w1, jnp.float32), jnp.asarray(b1)
        self.w2, self.b2 = jnp.asarray(w2, jnp.float32), jnp.asarray(b2)

        # TODO(synk): exact neusample `encoding.positional_encoding_1` unavailable;
        # standard sin/cos encoding with linearly spaced frequencies (log_sampling=False).
        if F > 1:
            freqs = np.linspace(1.0, 2.0 ** (F - 1), F).astype(np.float32)
        else:
            freqs = np.ones((1,), np.float32)
        self.freqs = freqs

        # ---- kernel-layout weights (static numpy rearrangements) ----
        pe_freq = np.zeros((D, FI), np.float32)          # arg = z @ pe_freq
        for f in range(F):
            for i in range(I):
                pe_freq[self.identity_features[i], f * I + i] = freqs[f]
        sin_rows = [2 * f * I + i for f in range(F) for i in range(I)]
        cos_rows = [2 * f * I + I + i for f in range(F) for i in range(I)]
        w1_sin, w1_cos, w1_ctx = w1[sin_rows, :], w1[cos_rows, :], w1[2 * F * I:, :]

        wcols = [t * mult + i for t in range(T) for i in range(k)]
        hcols = [t * mult + k + i for t in range(T) for i in range(k)]
        w2_w, b2_w = w2[:, wcols], b2[:, wcols]
        w2_h, b2_h = w2[:, hcols], b2[:, hcols]
        w2_d = np.zeros((H, WK1), np.float32)            # padded derivative logits
        b2_d = np.zeros((1, WK1), np.float32)
        for t in range(T):
            b2_d[0, t * (k + 1)] = DERIV_CONST
            b2_d[0, t * (k + 1) + k] = DERIV_CONST
            for j in range(1, k):
                w2_d[:, t * (k + 1) + j] = w2[:, t * mult + 2 * k + (j - 1)]
                b2_d[0, t * (k + 1) + j] = b2[0, t * mult + 2 * k + (j - 1)]

        # ---- structural constant matrices ----
        sel_t = np.zeros((D, T), np.float32)
        for t in range(T):
            sel_t[self.transform_features[t], t] = 1.0
        sum_mat = np.zeros((WK, WK), np.float32)         # block all-ones (softmax denom bcast)
        cum_mat = np.zeros((WK, WK1), np.float32)        # block exclusive cumsum
        for t in range(T):
            for i in range(k):
                sum_mat[t * k + i, t * k:(t + 1) * k] = 1.0
                for j in range(k + 1):
                    if i < j:
                        cum_mat[t * k + i, t * (k + 1) + j] = 1.0
        shift_mat = np.zeros((WK1, WK1), np.float32)     # next[c] = x[c+1]
        for c in range(WK1 - 1):
            shift_mat[c + 1, c] = 1.0
        rep_mat = np.zeros((T, WK1), np.float32)         # channel scalar -> K+1 lanes
        for t in range(T):
            rep_mat[t, t * (k + 1):(t + 1) * (k + 1)] = 1.0
        red_mat = rep_mat.T.copy()                       # per-channel sum reduction
        islast = np.zeros((1, WK1), np.float32)
        for t in range(T):
            islast[0, t * (k + 1) + k] = 1.0
        p_id = np.zeros((D, OUT_PAD), np.float32)        # identity-column scatter
        for d in self.identity_features:
            p_id[d, d] = 1.0
        p_t = np.zeros((T, OUT_PAD), np.float32)         # transform-column scatter
        for t in range(T):
            p_t[t, self.transform_features[t]] = 1.0
        p_lad = np.zeros((T, OUT_PAD), np.float32)       # sum over channels into column D
        p_lad[:, D] = 1.0

        self._side_inputs = tuple(
            jnp.asarray(a, jnp.float32) for a in
            (pe_freq, w1_sin, w1_cos, w1_ctx, b1, w2_w, b2_w, w2_h, b2_h, w2_d, b2_d,
             sel_t, cum_mat, sum_mat, shift_mat, rep_mat, red_mat, islast,
             p_id, p_t, p_lad))

    def forward(self, z, context):
        z = jnp.asarray(z, jnp.float32)
        context = jnp.asarray(context, jnp.float32)
        n, d = z.shape
        c = context.shape[1]

        tile = self.tile_rows
        if n < tile:
            tile = ((n + 7) // 8) * 8          # small batch: one 8-row-aligned tile
        n_pad = ((n + tile - 1) // tile) * tile
        if n_pad != n:
            z_p = jnp.pad(z, ((0, n_pad - n), (0, 0)))
            ctx_p = jnp.pad(context, ((0, n_pad - n), (0, 0)))
        else:
            z_p, ctx_p = z, context

        row_spec = lambda feat: pl.BlockSpec((tile, feat), lambda i: (i, 0))
        rep_spec = lambda arr: pl.BlockSpec(arr.shape, lambda i: (0, 0))
        side = self._side_inputs

        slab = pl.pallas_call(
            coupled_rqs_kernel,
            out_shape=jax.ShapeDtypeStruct((n_pad, OUT_PAD), jnp.float32),
            grid=(n_pad // tile,),
            in_specs=[row_spec(d), row_spec(c)] + [rep_spec(a) for a in side],
            out_specs=row_spec(OUT_PAD),
            compiler_params=pltpu.CompilerParams(
                dimension_semantics=("parallel",)),
        )(z_p, ctx_p, *side)

        return slab[:n, :d], slab[:n, d]


def _reference_forward(model, z, context):
    """Pure-JAX reimplementation (mirrors the PyTorch module semantics) for checking."""
    k, tb, mult = NUM_BINS, TAIL_BOUND, 3 * NUM_BINS - 1
    idf, tf = model.identity_features, model.transform_features
    ids, ts = z[:, idf], z[:, tf]
    feats = []
    for f in model.freqs:
        feats.append(jnp.sin(ids * float(f)))
        feats.append(jnp.cos(ids * float(f)))
    mlp_in = jnp.concatenate(feats + [context], axis=1)
    h = jnp.maximum(mlp_in @ model.w1 + model.b1, 0.0)
    params = h @ model.w2 + model.b2
    n = z.shape[0]
    outs, lads = [], []
    for t in range(model.num_transform):
        p = params[:, t * mult:(t + 1) * mult]
        uw, uh, ud = p[:, :k], p[:, k:2 * k], p[:, 2 * k:]
        x = ts[:, t]
        inside = (x >= -tb) & (x <= tb)
        xc = jnp.clip(x, -tb, tb)
        const = jnp.full((n, 1), DERIV_CONST, jnp.float32)
        derivs = MIN_DERIVATIVE + _softplus(jnp.concatenate([const, ud, const], axis=1))
        w = MIN_BIN_WIDTH + (1.0 - MIN_BIN_WIDTH * k) * jax.nn.softmax(uw, axis=-1)
        cw = jnp.concatenate([jnp.zeros((n, 1), jnp.float32), jnp.cumsum(w, -1)], axis=1)
        cw = (2.0 * tb * cw - tb).at[:, 0].set(-tb).at[:, -1].set(tb)
        w = cw[:, 1:] - cw[:, :-1]
        hh = MIN_BIN_HEIGHT + (1.0 - MIN_BIN_HEIGHT * k) * jax.nn.softmax(uh, axis=-1)
        ch = jnp.concatenate([jnp.zeros((n, 1), jnp.float32), jnp.cumsum(hh, -1)], axis=1)
        ch = (2.0 * tb * ch - tb).at[:, 0].set(-tb).at[:, -1].set(tb)
        hh = ch[:, 1:] - ch[:, :-1]
        locs = ch.at[:, -1].add(SEARCH_EPS)
        bidx = jnp.clip(jnp.sum((xc[:, None] >= locs).astype(jnp.int32), axis=1) - 1, 0, k - 1)
        g = lambda a: jnp.take_along_axis(a, bidx[:, None], axis=1)[:, 0]
        icw, iw, ich, ih = g(cw[:, :k]), g(w), g(ch[:, :k]), g(hh)
        idel, idd, idp1 = g(hh / w), g(derivs[:, :k]), g(derivs[:, 1:])
        dy = xc - ich
        s = idd + idp1 - 2.0 * idel
        aa = dy * s + ih * (idel - idd)
        bb = ih * idd - dy * s
        cc = -idel * dy
        root = (2.0 * cc) / (-bb - jnp.sqrt(jnp.maximum(bb * bb - 4.0 * aa * cc, 0.0)))
        y = root * iw + icw
        th = root * (1.0 - root)
        den = idel + s * th
        dnum = idel * idel * (idp1 * root * root + 2.0 * idel * th + idd * (1.0 - root) ** 2)
        lad = -(jnp.log(dnum) - 2.0 * jnp.log(den))
        outs.append(jnp.where(inside, y, x))
        lads.append(jnp.where(inside, lad, 0.0))
    out = jnp.zeros_like(z)
    out = out.at[:, idf].set(ids)
    out = out.at[:, tf].set(jnp.stack(outs, axis=1))
    return out, jnp.sum(jnp.stack(lads, axis=1), axis=1)


if __name__ == "__main__":
    D, C_CTX = 4, 8
    key = jax.random.PRNGKey(0)
    kz, kc, kz2, kc2 = jax.random.split(key, 4)

    # ---- small single-tile check ----
    N = 8
    z = jax.random.uniform(kz, (N, D), jnp.float32) * 3.0 - 1.5  # exercises tails + interior
    context = jax.random.normal(kc, (N, C_CTX), jnp.float32)
    model = CoupledRQSplinePallas(num_input_channels=D, context_features=C_CTX,
                                  encode=4, hidden=32)
    out, log_det = model.forward(z, context)
    out = jax.block_until_ready(out)
    log_det = jax.block_until_ready(log_det)
    assert out.shape == (N, D) and log_det.shape == (N,)
    assert bool(jnp.all(jnp.isfinite(out))) and bool(jnp.all(jnp.isfinite(log_det)))
    ref_out, ref_lad = _reference_forward(model, z, context)
    assert np.allclose(np.asarray(out), np.asarray(ref_out), atol=2e-2, rtol=2e-2)
    assert np.allclose(np.asarray(log_det), np.asarray(ref_lad), atol=2e-2, rtol=2e-2)

    # ---- multi-tile (pipelined, padded) check ----
    N2 = 300
    z2 = jax.random.uniform(kz2, (N2, D), jnp.float32) * 3.0 - 1.5
    context2 = jax.random.normal(kc2, (N2, C_CTX), jnp.float32)
    model2 = CoupledRQSplinePallas(num_input_channels=D, context_features=C_CTX,
                                   encode=4, hidden=32, tile_rows=128)
    out2, log_det2 = model2.forward(z2, context2)
    out2 = jax.block_until_ready(out2)
    log_det2 = jax.block_until_ready(log_det2)
    assert out2.shape == (N2, D) and log_det2.shape == (N2,)
    ref_out2, ref_lad2 = _reference_forward(model2, z2, context2)
    assert np.allclose(np.asarray(out2), np.asarray(ref_out2), atol=2e-2, rtol=2e-2)
    assert np.allclose(np.asarray(log_det2), np.asarray(ref_lad2), atol=2e-2, rtol=2e-2)

    print("KERNEL_OK")
</pallas_src>

<mosaic_0001>
module attributes {stable_mosaic.version = 11 : i64} {
  func.func @coupled_rqs_kernel(%arg0: i32, %arg1: memref<8x4xf32, #tpu.memory_space<vmem>>, %arg2: memref<8x8xf32, #tpu.memory_space<vmem>>, %arg3: memref<4x8xf32, #tpu.memory_space<vmem>>, %arg4: memref<8x32xf32, #tpu.memory_space<vmem>>, %arg5: memref<8x32xf32, #tpu.memory_space<vmem>>, %arg6: memref<8x32xf32, #tpu.memory_space<vmem>>, %arg7: memref<1x32xf32, #tpu.memory_space<vmem>>, %arg8: memref<32x16xf32, #tpu.memory_space<vmem>>, %arg9: memref<1x16xf32, #tpu.memory_space<vmem>>, %arg10: memref<32x16xf32, #tpu.memory_space<vmem>>, %arg11: memref<1x16xf32, #tpu.memory_space<vmem>>, %arg12: memref<32x18xf32, #tpu.memory_space<vmem>>, %arg13: memref<1x18xf32, #tpu.memory_space<vmem>>, %arg14: memref<4x2xf32, #tpu.memory_space<vmem>>, %arg15: memref<16x18xf32, #tpu.memory_space<vmem>>, %arg16: memref<16x16xf32, #tpu.memory_space<vmem>>, %arg17: memref<18x18xf32, #tpu.memory_space<vmem>>, %arg18: memref<2x18xf32, #tpu.memory_space<vmem>>, %arg19: memref<18x2xf32, #tpu.memory_space<vmem>>, %arg20: memref<1x18xf32, #tpu.memory_space<vmem>>, %arg21: memref<4x128xf32, #tpu.memory_space<vmem>>, %arg22: memref<2x128xf32, #tpu.memory_space<vmem>>, %arg23: memref<2x128xf32, #tpu.memory_space<vmem>>, %arg24: memref<8x128xf32, #tpu.memory_space<vmem>>) attributes {dimension_semantics = [#tpu.dimension_semantics<parallel>], iteration_bounds = array<i64: 1>, scalar_prefetch = 0 : i64, scratch_operands = 0 : i64, tpu.core_type = #tpu.core_type<tc>, window_params = [{transform_indices = @transform_0, window_bounds = array<i64: 8, 4>}, {transform_indices = @transform_1, window_bounds = array<i64: 8, 8>}, {pipeline_mode = #tpu.pipeline_mode<synchronous>, transform_indices = @transform_2, window_bounds = array<i64: 4, 8>}, {pipeline_mode = #tpu.pipeline_mode<synchronous>, transform_indices = @transform_3, window_bounds = array<i64: 8, 32>}, {pipeline_mode = #tpu.pipeline_mode<synchronous>, transform_indices = @transform_4, window_bounds = array<i64: 8, 32>}, {pipeline_mode = #tpu.pipeline_mode<synchronous>, transform_indices = @transform_5, window_bounds = array<i64: 8, 32>}, {pipeline_mode = #tpu.pipeline_mode<synchronous>, transform_indices = @transform_6, window_bounds = array<i64: 1, 32>}, {pipeline_mode = #tpu.pipeline_mode<synchronous>, transform_indices = @transform_7, window_bounds = array<i64: 32, 16>}, {pipeline_mode = #tpu.pipeline_mode<synchronous>, transform_indices = @transform_8, window_bounds = array<i64: 1, 16>}, {pipeline_mode = #tpu.pipeline_mode<synchronous>, transform_indices = @transform_9, window_bounds = array<i64: 32, 16>}, {pipeline_mode = #tpu.pipeline_mode<synchronous>, transform_indices = @transform_10, window_bounds = array<i64: 1, 16>}, {pipeline_mode = #tpu.pipeline_mode<synchronous>, transform_indices = @transform_11, window_bounds = array<i64: 32, 18>}, {pipeline_mode = #tpu.pipeline_mode<synchronous>, transform_indices = @transform_12, window_bounds = array<i64: 1, 18>}, {pipeline_mode = #tpu.pipeline_mode<synchronous>, transform_indices = @transform_13, window_bounds = array<i64: 4, 2>}, {pipeline_mode = #tpu.pipeline_mode<synchronous>, transform_indices = @transform_14, window_bounds = array<i64: 16, 18>}, {pipeline_mode = #tpu.pipeline_mode<synchronous>, transform_indices = @transform_15, window_bounds = array<i64: 16, 16>}, {pipeline_mode = #tpu.pipeline_mode<synchronous>, transform_indices = @transform_16, window_bounds = array<i64: 18, 18>}, {pipeline_mode = #tpu.pipeline_mode<synchronous>, transform_indices = @transform_17, window_bounds = array<i64: 2, 18>}, {pipeline_mode = #tpu.pipeline_mode<synchronous>, transform_indices = @transform_18, window_bounds = array<i64: 18, 2>}, {pipeline_mode = #tpu.pipeline_mode<synchronous>, transform_indices = @transform_19, window_bounds = array<i64: 1, 18>}, {pipeline_mode = #tpu.pipeline_mode<synchronous>, transform_indices = @transform_20, window_bounds = array<i64: 4, 128>}, {pipeline_mode = #tpu.pipeline_mode<synchronous>, transform_indices = @transform_21, window_bounds = array<i64: 2, 128>}, {pipeline_mode = #tpu.pipeline_mode<synchronous>, transform_indices = @transform_22, window_bounds = array<i64: 2, 128>}, {transform_indices = @transform_23, window_bounds = array<i64: 8, 128>}]} {
    %c0 = arith.constant 0 : index
    %c0_0 = arith.constant 0 : index
    %0 = vector.load %arg1[%c0, %c0_0] : memref<8x4xf32, #tpu.memory_space<vmem>>, vector<8x4xf32>
    %c0_1 = arith.constant 0 : index
    %c0_2 = arith.constant 0 : index
    %1 = vector.load %arg2[%c0_1, %c0_2] : memref<8x8xf32, #tpu.memory_space<vmem>>, vector<8x8xf32>
    %c0_3 = arith.constant 0 : index
    %c0_4 = arith.constant 0 : index
    %2 = vector.load %arg3[%c0_3, %c0_4] : memref<4x8xf32, #tpu.memory_space<vmem>>, vector<4x8xf32>
    %cst = arith.constant dense<0.000000e+00> : vector<8x8xf32>
    %3 = tpu.matmul %0, %2, %cst {dimension_numbers = #tpu.dot_dimension_numbers<[1], [0], [0], [1], [0, 0, 1, 1], [], []>} : vector<8x4xf32>, vector<4x8xf32>, vector<8x8xf32> -> vector<8x8xf32>
    %4 = math.sin %3 : vector<8x8xf32>
    %c0_5 = arith.constant 0 : index
    %c0_6 = arith.constant 0 : index
    %5 = vector.load %arg4[%c0_5, %c0_6] : memref<8x32xf32, #tpu.memory_space<vmem>>, vector<8x32xf32>
    %cst_7 = arith.constant dense<0.000000e+00> : vector<8x32xf32>
    %6 = tpu.matmul %4, %5, %cst_7 {dimension_numbers = #tpu.dot_dimension_numbers<[1], [0], [0], [1], [0, 0, 1, 1], [], []>} : vector<8x8xf32>, vector<8x32xf32>, vector<8x32xf32> -> vector<8x32xf32>
    %7 = math.cos %3 : vector<8x8xf32>
    %c0_8 = arith.constant 0 : index
    %c0_9 = arith.constant 0 : index
    %8 = vector.load %arg5[%c0_8, %c0_9] : memref<8x32xf32, #tpu.memory_space<vmem>>, vector<8x32xf32>
    %cst_10 = arith.constant dense<0.000000e+00> : vector<8x32xf32>
    %9 = tpu.matmul %7, %8, %cst_10 {dimension_numbers = #tpu.dot_dimension_numbers<[1], [0], [0], [1], [0, 0, 1, 1], [], []>} : vector<8x8xf32>, vector<8x32xf32>, vector<8x32xf32> -> vector<8x32xf32>
    %10 = arith.addf %6, %9 : vector<8x32xf32>
    %c0_11 = arith.constant 0 : index
    %c0_12 = arith.constant 0 : index
    %11 = vector.load %arg6[%c0_11, %c0_12] : memref<8x32xf32, #tpu.memory_space<vmem>>, vector<8x32xf32>
    %cst_13 = arith.constant dense<0.000000e+00> : vector<8x32xf32>
    %12 = tpu.matmul %1, %11, %cst_13 {dimension_numbers = #tpu.dot_dimension_numbers<[1], [0], [0], [1], [0, 0, 1, 1], [], []>} : vector<8x8xf32>, vector<8x32xf32>, vector<8x32xf32> -> vector<8x32xf32>
    %13 = arith.addf %10, %12 : vector<8x32xf32>
    %c0_14 = arith.constant 0 : index
    %c0_15 = arith.constant 0 : index
    %14 = vector.load %arg7[%c0_14, %c0_15] : memref<1x32xf32, #tpu.memory_space<vmem>>, vector<1x32xf32>
    %15 = vector.broadcast %14 : vector<1x32xf32> to vector<8x32xf32>
    %16 = arith.addf %13, %15 : vector<8x32xf32>
    %cst_16 = arith.constant 0.000000e+00 : f32
    %17 = vector.broadcast %cst_16 : f32 to vector<8x32xf32>
    %18 = arith.maximumf %16, %17 : vector<8x32xf32>
    %c0_17 = arith.constant 0 : index
    %c0_18 = arith.constant 0 : index
    %19 = vector.load %arg8[%c0_17, %c0_18] : memref<32x16xf32, #tpu.memory_space<vmem>>, vector<32x16xf32>
    %cst_19 = arith.constant dense<0.000000e+00> : vector<8x16xf32>
    %20 = tpu.matmul %18, %19, %cst_19 {dimension_numbers = #tpu.dot_dimension_numbers<[1], [0], [0], [1], [0, 0, 1, 1], [], []>} : vector<8x32xf32>, vector<32x16xf32>, vector<8x16xf32> -> vector<8x16xf32>
    %c0_20 = arith.constant 0 : index
    %c0_21 = arith.constant 0 : index
    %21 = vector.load %arg9[%c0_20, %c0_21] : memref<1x16xf32, #tpu.memory_space<vmem>>, vector<1x16xf32>
    %22 = vector.broadcast %21 : vector<1x16xf32> to vector<8x16xf32>
    %23 = arith.addf %20, %22 : vector<8x16xf32>
    %c0_22 = arith.constant 0 : index
    %c0_23 = arith.constant 0 : index
    %24 = vector.load %arg10[%c0_22, %c0_23] : memref<32x16xf32, #tpu.memory_space<vmem>>, vector<32x16xf32>
    %cst_24 = arith.constant dense<0.000000e+00> : vector<8x16xf32>
    %25 = tpu.matmul %18, %24, %cst_24 {dimension_numbers = #tpu.dot_dimension_numbers<[1], [0], [0], [1], [0, 0, 1, 1], [], []>} : vector<8x32xf32>, vector<32x16xf32>, vector<8x16xf32> -> vector<8x16xf32>
    %c0_25 = arith.constant 0 : index
    %c0_26 = arith.constant 0 : index
    %26 = vector.load %arg11[%c0_25, %c0_26] : memref<1x16xf32, #tpu.memory_space<vmem>>, vector<1x16xf32>
    %27 = vector.broadcast %26 : vector<1x16xf32> to vector<8x16xf32>
    %28 = arith.addf %25, %27 : vector<8x16xf32>
    %c0_27 = arith.constant 0 : index
    %c0_28 = arith.constant 0 : index
    %29 = vector.load %arg12[%c0_27, %c0_28] : memref<32x18xf32, #tpu.memory_space<vmem>>, vector<32x18xf32>
    %cst_29 = arith.constant dense<0.000000e+00> : vector<8x18xf32>
    %30 = tpu.matmul %18, %29, %cst_29 {dimension_numbers = #tpu.dot_dimension_numbers<[1], [0], [0], [1], [0, 0, 1, 1], [], []>} : vector<8x32xf32>, vector<32x18xf32>, vector<8x18xf32> -> vector<8x18xf32>
    %c0_30 = arith.constant 0 : index
    %c0_31 = arith.constant 0 : index
    %31 = vector.load %arg13[%c0_30, %c0_31] : memref<1x18xf32, #tpu.memory_space<vmem>>, vector<1x18xf32>
    %32 = vector.broadcast %31 : vector<1x18xf32> to vector<8x18xf32>
    %33 = arith.addf %30, %32 : vector<8x18xf32>
    %c0_32 = arith.constant 0 : index
    %c0_33 = arith.constant 0 : index
    %34 = vector.load %arg14[%c0_32, %c0_33] : memref<4x2xf32, #tpu.memory_space<vmem>>, vector<4x2xf32>
    %cst_34 = arith.constant dense<0.000000e+00> : vector<8x2xf32>
    %35 = tpu.matmul %0, %34, %cst_34 {dimension_numbers = #tpu.dot_dimension_numbers<[1], [0], [0], [1], [0, 0, 1, 1], [], []>} : vector<8x4xf32>, vector<4x2xf32>, vector<8x2xf32> -> vector<8x2xf32>
    %cst_35 = arith.constant -1.000000e+00 : f32
    %36 = vector.broadcast %cst_35 : f32 to vector<8x2xf32>
    %37 = arith.cmpf oge, %35, %36 : vector<8x2xf32>
    %cst_36 = arith.constant 1.000000e+00 : f32
    %38 = vector.broadcast %cst_36 : f32 to vector<8x2xf32>
    %39 = arith.cmpf ole, %35, %38 : vector<8x2xf32>
    %40 = arith.andi %37, %39 : vector<8x2xi1>
    %41 = arith.extui %40 : vector<8x2xi1> to vector<8x2xi32>
    %42 = arith.sitofp %41 : vector<8x2xi32> to vector<8x2xf32>
    %cst_37 = arith.constant -1.000000e+00 : f32
    %cst_38 = arith.constant 1.000000e+00 : f32
    %43 = vector.broadcast %cst_37 : f32 to vector<8x2xf32>
    %44 = arith.maximumf %43, %35 : vector<8x2xf32>
    %45 = vector.broadcast %cst_38 : f32 to vector<8x2xf32>
    %46 = arith.minimumf %45, %44 : vector<8x2xf32>
    %c0_39 = arith.constant 0 : index
    %c0_40 = arith.constant 0 : index
    %47 = vector.load %arg20[%c0_39, %c0_40] : memref<1x18xf32, #tpu.memory_space<vmem>>, vector<1x18xf32>
    %cst_41 = arith.constant 1.000000e+00 : f32
    %48 = vector.broadcast %cst_41 : f32 to vector<1x18xf32>
    %49 = arith.subf %48, %47 : vector<1x18xf32>
    %c0_42 = arith.constant 0 : index
    %c0_43 = arith.constant 0 : index
    %50 = vector.load %arg16[%c0_42, %c0_43] : memref<16x16xf32, #tpu.memory_space<vmem>>, vector<16x16xf32>
    %c0_44 = arith.constant 0 : index
    %c0_45 = arith.constant 0 : index
    %51 = vector.load %arg15[%c0_44, %c0_45] : memref<16x18xf32, #tpu.memory_space<vmem>>, vector<16x18xf32>
    %c0_46 = arith.constant 0 : index
    %c0_47 = arith.constant 0 : index
    %52 = vector.load %arg17[%c0_46, %c0_47] : memref<18x18xf32, #tpu.memory_space<vmem>>, vector<18x18xf32>
    %cst_48 = arith.constant dense<0xFF800000> : vector<8xf32>
    %53 = vector.multi_reduction <maximumf>, %23, %cst_48 [1] : vector<8x16xf32> to vector<8xf32>
    %54 = vector.shape_cast %53 : vector<8xf32> to vector<8x1xf32>
    %55 = vector.broadcast %54 : vector<8x1xf32> to vector<8x16xf32>
    %56 = arith.subf %23, %55 : vector<8x16xf32>
    %57 = math.exp %56 : vector<8x16xf32>
    %cst_49 = arith.constant dense<0.000000e+00> : vector<8x16xf32>
    %58 = tpu.matmul %57, %50, %cst_49 {dimension_numbers = #tpu.dot_dimension_numbers<[1], [0], [0], [1], [0, 0, 1, 1], [], []>} : vector<8x16xf32>, vector<16x16xf32>, vector<8x16xf32> -> vector<8x16xf32>
    %59 = arith.divf %57, %58 : vector<8x16xf32>
    %cst_50 = arith.constant 0.991999983 : f32
    %60 = vector.broadcast %cst_50 : f32 to vector<8x16xf32>
    %61 = arith.mulf %60, %59 : vector<8x16xf32>
    %cst_51 = arith.constant 1.000000e-03 : f32
    %62 = vector.broadcast %cst_51 : f32 to vector<8x16xf32>
    %63 = arith.addf %62, %61 : vector<8x16xf32>
    %cst_52 = arith.constant dense<0.000000e+00> : vector<8x18xf32>
    %64 = tpu.matmul %63, %51, %cst_52 {dimension_numbers = #tpu.dot_dimension_numbers<[1], [0], [0], [1], [0, 0, 1, 1], [], []>} : vector<8x16xf32>, vector<16x18xf32>, vector<8x18xf32> -> vector<8x18xf32>
    %cst_53 = arith.constant 2.000000e+00 : f32
    %65 = vector.broadcast %cst_53 : f32 to vector<8x18xf32>
    %66 = arith.mulf %65, %64 : vector<8x18xf32>
    %cst_54 = arith.constant 1.000000e+00 : f32
    %67 = vector.broadcast %cst_54 : f32 to vector<8x18xf32>
    %68 = arith.subf %66, %67 : vector<8x18xf32>
    %69 = vector.broadcast %49 : vector<1x18xf32> to vector<8x18xf32>
    %70 = arith.mulf %68, %69 : vector<8x18xf32>
    %cst_55 = arith.constant 1.000000e+00 : f32
    %71 = vector.broadcast %cst_55 : f32 to vector<1x18xf32>
    %72 = arith.mulf %71, %47 : vector<1x18xf32>
    %73 = vector.broadcast %72 : vector<1x18xf32> to vector<8x18xf32>
    %74 = arith.addf %70, %73 : vector<8x18xf32>
    %cst_56 = arith.constant dense<0xFF800000> : vector<8xf32>
    %75 = vector.multi_reduction <maximumf>, %28, %cst_56 [1] : vector<8x16xf32> to vector<8xf32>
    %76 = vector.shape_cast %75 : vector<8xf32> to vector<8x1xf32>
    %77 = vector.broadcast %76 : vector<8x1xf32> to vector<8x16xf32>
    %78 = arith.subf %28, %77 : vector<8x16xf32>
    %79 = math.exp %78 : vector<8x16xf32>
    %cst_57 = arith.constant dense<0.000000e+00> : vector<8x16xf32>
    %80 = tpu.matmul %79, %50, %cst_57 {dimension_numbers = #tpu.dot_dimension_numbers<[1], [0], [0], [1], [0, 0, 1, 1], [], []>} : vector<8x16xf32>, vector<16x16xf32>, vector<8x16xf32> -> vector<8x16xf32>
    %81 = arith.divf %79, %80 : vector<8x16xf32>
    %cst_58 = arith.constant 0.991999983 : f32
    %82 = vector.broadcast %cst_58 : f32 to vector<8x16xf32>
    %83 = arith.mulf %82, %81 : vector<8x16xf32>
    %cst_59 = arith.constant 1.000000e-03 : f32
    %84 = vector.broadcast %cst_59 : f32 to vector<8x16xf32>
    %85 = arith.addf %84, %83 : vector<8x16xf32>
    %cst_60 = arith.constant dense<0.000000e+00> : vector<8x18xf32>
    %86 = tpu.matmul %85, %51, %cst_60 {dimension_numbers = #tpu.dot_dimension_numbers<[1], [0], [0], [1], [0, 0, 1, 1], [], []>} : vector<8x16xf32>, vector<16x18xf32>, vector<8x18xf32> -> vector<8x18xf32>
    %cst_61 = arith.constant 2.000000e+00 : f32
    %87 = vector.broadcast %cst_61 : f32 to vector<8x18xf32>
    %88 = arith.mulf %87, %86 : vector<8x18xf32>
    %cst_62 = arith.constant 1.000000e+00 : f32
    %89 = vector.broadcast %cst_62 : f32 to vector<8x18xf32>
    %90 = arith.subf %88, %89 : vector<8x18xf32>
    %91 = vector.broadcast %49 : vector<1x18xf32> to vector<8x18xf32>
    %92 = arith.mulf %90, %91 : vector<8x18xf32>
    %cst_63 = arith.constant 1.000000e+00 : f32
    %93 = vector.broadcast %cst_63 : f32 to vector<1x18xf32>
    %94 = arith.mulf %93, %47 : vector<1x18xf32>
    %95 = vector.broadcast %94 : vector<1x18xf32> to vector<8x18xf32>
    %96 = arith.addf %92, %95 : vector<8x18xf32>
    %cst_64 = arith.constant 2.000000e+01 : f32
    %97 = vector.broadcast %cst_64 : f32 to vector<8x18xf32>
    %98 = arith.cmpf ogt, %33, %97 : vector<8x18xf32>
    %cst_65 = arith.constant 2.000000e+01 : f32
    %99 = vector.broadcast %cst_65 : f32 to vector<8x18xf32>
    %100 = arith.minimumf %33, %99 : vector<8x18xf32>
    %101 = math.exp %100 : vector<8x18xf32>
    %102 = math.log1p %101 : vector<8x18xf32>
    %103 = arith.select %98, %33, %102 : vector<8x18xi1>, vector<8x18xf32>
    %cst_66 = arith.constant 1.000000e-03 : f32
    %104 = vector.broadcast %cst_66 : f32 to vector<8x18xf32>
    %105 = arith.addf %104, %103 : vector<8x18xf32>
    %cst_67 = arith.constant dense<0.000000e+00> : vector<8x18xf32>
    %106 = tpu.matmul %74, %52, %cst_67 {dimension_numbers = #tpu.dot_dimension_numbers<[1], [0], [0], [1], [0, 0, 1, 1], [], []>} : vector<8x18xf32>, vector<18x18xf32>, vector<8x18xf32> -> vector<8x18xf32>
    %cst_68 = arith.constant dense<0.000000e+00> : vector<8x18xf32>
    %107 = tpu.matmul %96, %52, %cst_68 {dimension_numbers = #tpu.dot_dimension_numbers<[1], [0], [0], [1], [0, 0, 1, 1], [], []>} : vector<8x18xf32>, vector<18x18xf32>, vector<8x18xf32> -> vector<8x18xf32>
    %cst_69 = arith.constant dense<0.000000e+00> : vector<8x18xf32>
    %108 = tpu.matmul %105, %52, %cst_69 {dimension_numbers = #tpu.dot_dimension_numbers<[1], [0], [0], [1], [0, 0, 1, 1], [], []>} : vector<8x18xf32>, vector<18x18xf32>, vector<8x18xf32> -> vector<8x18xf32>
    %c0_70 = arith.constant 0 : index
    %c0_71 = arith.constant 0 : index
    %109 = vector.load %arg18[%c0_70, %c0_71] : memref<2x18xf32, #tpu.memory_space<vmem>>, vector<2x18xf32>
    %cst_72 = arith.constant dense<0.000000e+00> : vector<8x18xf32>
    %110 = tpu.matmul %46, %109, %cst_72 {dimension_numbers = #tpu.dot_dimension_numbers<[1], [0], [0], [1], [0, 0, 1, 1], [], []>} : vector<8x2xf32>, vector<2x18xf32>, vector<8x18xf32> -> vector<8x18xf32>
    %cst_73 = arith.constant 9.99999997E-7 : f32
    %111 = vector.broadcast %cst_73 : f32 to vector<1x18xf32>
    %112 = arith.mulf %111, %47 : vector<1x18xf32>
    %113 = vector.broadcast %112 : vector<1x18xf32> to vector<8x18xf32>
    %114 = arith.addf %96, %113 : vector<8x18xf32>
    %115 = arith.cmpf oge, %110, %114 : vector<8x18xf32>
    %116 = arith.extui %115 : vector<8x18xi1> to vector<8x18xi32>
    %117 = arith.sitofp %116 : vector<8x18xi32> to vector<8x18xf32>
    %cst_74 = arith.constant dense<0.000000e+00> : vector<8x18xf32>
    %118 = tpu.matmul %117, %52, %cst_74 {dimension_numbers = #tpu.dot_dimension_numbers<[1], [0], [0], [1], [0, 0, 1, 1], [], []>} : vector<8x18xf32>, vector<18x18xf32>, vector<8x18xf32> -> vector<8x18xf32>
    %cst_75 = arith.constant 1.000000e+00 : f32
    %119 = vector.broadcast %cst_75 : f32 to vector<8x18xf32>
    %120 = arith.subf %119, %118 : vector<8x18xf32>
    %121 = arith.mulf %117, %120 : vector<8x18xf32>
    %cst_76 = arith.constant 5.000000e-01 : f32
    %122 = vector.broadcast %cst_76 : f32 to vector<8x18xf32>
    %123 = arith.cmpf ogt, %121, %122 : vector<8x18xf32>
    %124 = arith.subf %106, %74 : vector<8x18xf32>
    %125 = arith.subf %107, %96 : vector<8x18xf32>
    %126 = arith.divf %125, %124 : vector<8x18xf32>
    %127 = arith.subf %110, %96 : vector<8x18xf32>
    %128 = arith.addf %105, %108 : vector<8x18xf32>
    %cst_77 = arith.constant 2.000000e+00 : f32
    %129 = vector.broadcast %cst_77 : f32 to vector<8x18xf32>
    %130 = arith.mulf %129, %126 : vector<8x18xf32>
    %131 = arith.subf %128, %130 : vector<8x18xf32>
    %132 = arith.mulf %127, %131 : vector<8x18xf32>
    %133 = arith.subf %126, %105 : vector<8x18xf32>
    %134 = arith.mulf %125, %133 : vector<8x18xf32>
    %135 = arith.addf %132, %134 : vector<8x18xf32>
    %136 = arith.mulf %125, %105 : vector<8x18xf32>
    %137 = arith.mulf %127, %131 : vector<8x18xf32>
    %138 = arith.subf %136, %137 : vector<8x18xf32>
    %cst_78 = arith.constant 0.000000e+00 : f32
    %139 = vector.broadcast %cst_78 : f32 to vector<8x18xf32>
    %140 = arith.subf %139, %126 : vector<8x18xf32>
    %141 = arith.mulf %140, %127 : vector<8x18xf32>
    %142 = arith.mulf %138, %138 : vector<8x18xf32>
    %cst_79 = arith.constant 4.000000e+00 : f32
    %143 = vector.broadcast %cst_79 : f32 to vector<8x18xf32>
    %144 = arith.mulf %143, %135 : vector<8x18xf32>
    %145 = arith.mulf %144, %141 : vector<8x18xf32>
    %146 = arith.subf %142, %145 : vector<8x18xf32>
    %cst_80 = arith.constant 0.000000e+00 : f32
    %147 = vector.broadcast %cst_80 : f32 to vector<8x18xf32>
    %148 = arith.maximumf %146, %147 : vector<8x18xf32>
    %cst_81 = arith.constant 2.000000e+00 : f32
    %149 = vector.broadcast %cst_81 : f32 to vector<8x18xf32>
    %150 = arith.mulf %149, %141 : vector<8x18xf32>
    %cst_82 = arith.constant 0.000000e+00 : f32
    %151 = vector.broadcast %cst_82 : f32 to vector<8x18xf32>
    %152 = arith.subf %151, %138 : vector<8x18xf32>
    %153 = math.sqrt %148 : vector<8x18xf32>
    %154 = arith.subf %152, %153 : vector<8x18xf32>
    %155 = arith.divf %150, %154 : vector<8x18xf32>
    %156 = arith.mulf %155, %124 : vector<8x18xf32>
    %157 = arith.addf %156, %74 : vector<8x18xf32>
    %cst_83 = arith.constant 1.000000e+00 : f32
    %158 = vector.broadcast %cst_83 : f32 to vector<8x18xf32>
    %159 = arith.subf %158, %155 : vector<8x18xf32>
    %160 = arith.mulf %155, %159 : vector<8x18xf32>
    %161 = arith.mulf %131, %160 : vector<8x18xf32>
    %162 = arith.addf %126, %161 : vector<8x18xf32>
    %163 = arith.mulf %126, %126 : vector<8x18xf32>
    %164 = arith.mulf %108, %155 : vector<8x18xf32>
    %165 = arith.mulf %164, %155 : vector<8x18xf32>
    %cst_84 = arith.constant 2.000000e+00 : f32
    %166 = vector.broadcast %cst_84 : f32 to vector<8x18xf32>
    %167 = arith.mulf %166, %126 : vector<8x18xf32>
    %168 = arith.mulf %167, %160 : vector<8x18xf32>
    %169 = arith.addf %165, %168 : vector<8x18xf32>
    %cst_85 = arith.constant 1.000000e+00 : f32
    %170 = vector.broadcast %cst_85 : f32 to vector<8x18xf32>
    %171 = arith.subf %170, %155 : vector<8x18xf32>
    %172 = arith.mulf %105, %171 : vector<8x18xf32>
    %cst_86 = arith.constant 1.000000e+00 : f32
    %173 = vector.broadcast %cst_86 : f32 to vector<8x18xf32>
    %174 = arith.subf %173, %155 : vector<8x18xf32>
    %175 = arith.mulf %172, %174 : vector<8x18xf32>
    %176 = arith.addf %169, %175 : vector<8x18xf32>
    %177 = arith.mulf %163, %176 : vector<8x18xf32>
    %178 = arith.mulf %162, %162 : vector<8x18xf32>
    %179 = arith.divf %178, %177 : vector<8x18xf32>
    %180 = math.log %179 : vector<8x18xf32>
    %c0_87 = arith.constant 0 : index
    %c0_88 = arith.constant 0 : index
    %181 = vector.load %arg19[%c0_87, %c0_88] : memref<18x2xf32, #tpu.memory_space<vmem>>, vector<18x2xf32>
    %cst_89 = arith.constant 0.000000e+00 : f32
    %182 = vector.broadcast %cst_89 : f32 to vector<8x18xf32>
    %183 = arith.select %123, %157, %182 : vector<8x18xi1>, vector<8x18xf32>
    %cst_90 = arith.constant dense<0.000000e+00> : vector<8x2xf32>
    %184 = tpu.matmul %183, %181, %cst_90 {dimension_numbers = #tpu.dot_dimension_numbers<[1], [0], [0], [1], [0, 0, 1, 1], [], []>} : vector<8x18xf32>, vector<18x2xf32>, vector<8x2xf32> -> vector<8x2xf32>
    %cst_91 = arith.constant 0.000000e+00 : f32
    %185 = vector.broadcast %cst_91 : f32 to vector<8x18xf32>
    %186 = arith.select %123, %180, %185 : vector<8x18xi1>, vector<8x18xf32>
    %cst_92 = arith.constant dense<0.000000e+00> : vector<8x2xf32>
    %187 = tpu.matmul %186, %181, %cst_92 {dimension_numbers = #tpu.dot_dimension_numbers<[1], [0], [0], [1], [0, 0, 1, 1], [], []>} : vector<8x18xf32>, vector<18x2xf32>, vector<8x2xf32> -> vector<8x2xf32>
    %188 = arith.mulf %42, %184 : vector<8x2xf32>
    %cst_93 = arith.constant 1.000000e+00 : f32
    %189 = vector.broadcast %cst_93 : f32 to vector<8x2xf32>
    %190 = arith.subf %189, %42 : vector<8x2xf32>
    %191 = arith.mulf %190, %35 : vector<8x2xf32>
    %192 = arith.addf %188, %191 : vector<8x2xf32>
    %193 = arith.mulf %42, %187 : vector<8x2xf32>
    %c0_94 = arith.constant 0 : index
    %c0_95 = arith.constant 0 : index
    %194 = vector.load %arg21[%c0_94, %c0_95] : memref<4x128xf32, #tpu.memory_space<vmem>>, vector<4x128xf32>
    %cst_96 = arith.constant dense<0.000000e+00> : vector<8x128xf32>
    %195 = tpu.matmul %0, %194, %cst_96 {dimension_numbers = #tpu.dot_dimension_numbers<[1], [0], [0], [1], [0, 0, 1, 1], [], []>} : vector<8x4xf32>, vector<4x128xf32>, vector<8x128xf32> -> vector<8x128xf32>
    %c0_97 = arith.constant 0 : index
    %c0_98 = arith.constant 0 : index
    %196 = vector.load %arg22[%c0_97, %c0_98] : memref<2x128xf32, #tpu.memory_space<vmem>>, vector<2x128xf32>
    %cst_99 = arith.constant dense<0.000000e+00> : vector<8x128xf32>
    %197 = tpu.matmul %192, %196, %cst_99 {dimension_numbers = #tpu.dot_dimension_numbers<[1], [0], [0], [1], [0, 0, 1, 1], [], []>} : vector<8x2xf32>, vector<2x128xf32>, vector<8x128xf32> -> vector<8x128xf32>
    %198 = arith.addf %195, %197 : vector<8x128xf32>
    %c0_100 = arith.constant 0 : index
    %c0_101 = arith.constant 0 : index
    %199 = vector.load %arg23[%c0_100, %c0_101] : memref<2x128xf32, #tpu.memory_space<vmem>>, vector<2x128xf32>
    %cst_102 = arith.constant dense<0.000000e+00> : vector<8x128xf32>
    %200 = tpu.matmul %193, %199, %cst_102 {dimension_numbers = #tpu.dot_dimension_numbers<[1], [0], [0], [1], [0, 0, 1, 1], [], []>} : vector<8x2xf32>, vector<2x128xf32>, vector<8x128xf32> -> vector<8x128xf32>
    %201 = arith.addf %198, %200 : vector<8x128xf32>
    %c0_103 = arith.constant 0 : index
    %c0_104 = arith.constant 0 : index
    %202 = vector.load %arg24[%c0_103, %c0_104] : memref<8x128xf32, #tpu.memory_space<vmem>>, vector<8x128xf32>
    tpu.vector_store %arg24[%c0_103, %c0_104], %201 {strides = array<i32>} : memref<8x128xf32, #tpu.memory_space<vmem>>, vector<8x128xf32>,
    return
  }
  func.func @transform_0(%arg0: i32) -> (i32, i32) {
    %c0_i32 = arith.constant 0 : i32
    %c0_i32_0 = arith.constant 0 : i32
    return %arg0, %c0_i32 : i32, i32
  }
  func.func @transform_1(%arg0: i32) -> (i32, i32) {
    %c0_i32 = arith.constant 0 : i32
    %c0_i32_0 = arith.constant 0 : i32
    return %arg0, %c0_i32 : i32, i32
  }
  func.func @transform_2(%arg0: i32) -> (i32, i32) {
    %c0_i32 = arith.constant 0 : i32
    %c0_i32_0 = arith.constant 0 : i32
    %c0_i32_1 = arith.constant 0 : i32
    return %c0_i32, %c0_i32_0 : i32, i32
  }
  func.func @transform_3(%arg0: i32) -> (i32, i32) {
    %c0_i32 = arith.constant 0 : i32
    %c0_i32_0 = arith.constant 0 : i32
    %c0_i32_1 = arith.constant 0 : i32
    return %c0_i32, %c0_i32_0 : i32, i32
  }
  func.func @transform_4(%arg0: i32) -> (i32, i32) {
    %c0_i32 = arith.constant 0 : i32
    %c0_i32_0 = arith.constant 0 : i32
    %c0_i32_1 = arith.constant 0 : i32
    return %c0_i32, %c0_i32_0 : i32, i32
  }
  func.func @transform_5(%arg0: i32) -> (i32, i32) {
    %c0_i32 = arith.constant 0 : i32
    %c0_i32_0 = arith.constant 0 : i32
    %c0_i32_1 = arith.constant 0 : i32
    return %c0_i32, %c0_i32_0 : i32, i32
  }
  func.func @transform_6(%arg0: i32) -> (i32, i32) {
    %c0_i32 = arith.constant 0 : i32
    %c0_i32_0 = arith.constant 0 : i32
    %c0_i32_1 = arith.constant 0 : i32
    return %c0_i32, %c0_i32_0 : i32, i32
  }
  func.func @transform_7(%arg0: i32) -> (i32, i32) {
    %c0_i32 = arith.constant 0 : i32
    %c0_i32_0 = arith.constant 0 : i32
    %c0_i32_1 = arith.constant 0 : i32
    return %c0_i32, %c0_i32_0 : i32, i32
  }
  func.func @transform_8(%arg0: i32) -> (i32, i32) {
    %c0_i32 = arith.constant 0 : i32
    %c0_i32_0 = arith.constant 0 : i32
    %c0_i32_1 = arith.constant 0 : i32
    return %c0_i32, %c0_i32_0 : i32, i32
  }
  func.func @transform_9(%arg0: i32) -> (i32, i32) {
    %c0_i32 = arith.constant 0 : i32
    %c0_i32_0 = arith.constant 0 : i32
    %c0_i32_1 = arith.constant 0 : i32
    return %c0_i32, %c0_i32_0 : i32, i32
  }
  func.func @transform_10(%arg0: i32) -> (i32, i32) {
    %c0_i32 = arith.constant 0 : i32
    %c0_i32_0 = arith.constant 0 : i32
    %c0_i32_1 = arith.constant 0 : i32
    return %c0_i32, %c0_i32_0 : i32, i32
  }
  func.func @transform_11(%arg0: i32) -> (i32, i32) {
    %c0_i32 = arith.constant 0 : i32
    %c0_i32_0 = arith.constant 0 : i32
    %c0_i32_1 = arith.constant 0 : i32
    return %c0_i32, %c0_i32_0 : i32, i32
  }
  func.func @transform_12(%arg0: i32) -> (i32, i32) {
    %c0_i32 = arith.constant 0 : i32
    %c0_i32_0 = arith.constant 0 : i32
    %c0_i32_1 = arith.constant 0 : i32
    return %c0_i32, %c0_i32_0 : i32, i32
  }
  func.func @transform_13(%arg0: i32) -> (i32, i32) {
    %c0_i32 = arith.constant 0 : i32
    %c0_i32_0 = arith.constant 0 : i32
    %c0_i32_1 = arith.constant 0 : i32
    return %c0_i32, %c0_i32_0 : i32, i32
  }
  func.func @transform_14(%arg0: i32) -> (i32, i32) {
    %c0_i32 = arith.constant 0 : i32
    %c0_i32_0 = arith.constant 0 : i32
    %c0_i32_1 = arith.constant 0 : i32
    return %c0_i32, %c0_i32_0 : i32, i32
  }
  func.func @transform_15(%arg0: i32) -> (i32, i32) {
    %c0_i32 = arith.constant 0 : i32
    %c0_i32_0 = arith.constant 0 : i32
    %c0_i32_1 = arith.constant 0 : i32
    return %c0_i32, %c0_i32_0 : i32, i32
  }
  func.func @transform_16(%arg0: i32) -> (i32, i32) {
    %c0_i32 = arith.constant 0 : i32
    %c0_i32_0 = arith.constant 0 : i32
    %c0_i32_1 = arith.constant 0 : i32
    return %c0_i32, %c0_i32_0 : i32, i32
  }
  func.func @transform_17(%arg0: i32) -> (i32, i32) {
    %c0_i32 = arith.constant 0 : i32
    %c0_i32_0 = arith.constant 0 : i32
    %c0_i32_1 = arith.constant 0 : i32
    return %c0_i32, %c0_i32_0 : i32, i32
  }
  func.func @transform_18(%arg0: i32) -> (i32, i32) {
    %c0_i32 = arith.constant 0 : i32
    %c0_i32_0 = arith.constant 0 : i32
    %c0_i32_1 = arith.constant 0 : i32
    return %c0_i32, %c0_i32_0 : i32, i32
  }
  func.func @transform_19(%arg0: i32) -> (i32, i32) {
    %c0_i32 = arith.constant 0 : i32
    %c0_i32_0 = arith.constant 0 : i32
    %c0_i32_1 = arith.constant 0 : i32
    return %c0_i32, %c0_i32_0 : i32, i32
  }
  func.func @transform_20(%arg0: i32) -> (i32, i32) {
    %c0_i32 = arith.constant 0 : i32
    %c0_i32_0 = arith.constant 0 : i32
    %c0_i32_1 = arith.constant 0 : i32
    return %c0_i32, %c0_i32_0 : i32, i32
  }
  func.func @transform_21(%arg0: i32) -> (i32, i32) {
    %c0_i32 = arith.constant 0 : i32
    %c0_i32_0 = arith.constant 0 : i32
    %c0_i32_1 = arith.constant 0 : i32
    return %c0_i32, %c0_i32_0 : i32, i32
  }
  func.func @transform_22(%arg0: i32) -> (i32, i32) {
    %c0_i32 = arith.constant 0 : i32
    %c0_i32_0 = arith.constant 0 : i32
    %c0_i32_1 = arith.constant 0 : i32
    return %c0_i32, %c0_i32_0 : i32, i32
  }
  func.func @transform_23(%arg0: i32) -> (i32, i32) {
    %c0_i32 = arith.constant 0 : i32
    %c0_i32_0 = arith.constant 0 : i32
    return %arg0, %c0_i32 : i32, i32
  }
}

</mosaic_0001>

<llo_original>
// kernel: tpu_custom_call.1
$region0: #{tpu_custom_call.1}
  #allocation0 [shape = 'u32[]', space=smem, size = 0x4, offset = 0x4, fixed_abs, tag = 'smem constant byte address 0x4 - core index']
  #allocation1 [shape = 'u32[144,128]{1,0:T(1,128)}', space=vmem, size = 0x12000, scoped, tag = 'internal scratch']
  %s0 = inlined_call_operand.vmem [shape: f32[8,4], index: 0, kind: input, shape index: {}]
  %s1 = inlined_call_operand.vmem [shape: f32[8,8], index: 1, kind: input, shape index: {}]
  %s2 = inlined_call_operand.vmem [shape: f32[4,8], index: 2, kind: input, shape index: {}]
  %s3 = inlined_call_operand.vmem [shape: f32[8,32], index: 3, kind: input, shape index: {}]
  %s4 = inlined_call_operand.vmem [shape: f32[8,32], index: 4, kind: input, shape index: {}]
  %s5 = inlined_call_operand.vmem [shape: f32[8,32], index: 5, kind: input, shape index: {}]
  %s6 = inlined_call_operand.vmem [shape: f32[1,32], index: 6, kind: input, shape index: {}]
  %s7 = inlined_call_operand.vmem [shape: f32[32,16], index: 7, kind: input, shape index: {}]
  %s8 = inlined_call_operand.vmem [shape: f32[1,16], index: 8, kind: input, shape index: {}]
  %s9 = inlined_call_operand.vmem [shape: f32[32,16], index: 9, kind: input, shape index: {}]
  %s10 = inlined_call_operand.vmem [shape: f32[1,16], index: 10, kind: input, shape index: {}]
  %s11 = inlined_call_operand.vmem [shape: f32[32,18], index: 11, kind: input, shape index: {}]
  %s12 = inlined_call_operand.vmem [shape: f32[1,18], index: 12, kind: input, shape index: {}]
  %s13 = inlined_call_operand.vmem [shape: f32[4,2], index: 13, kind: input, shape index: {}]
  %s14 = inlined_call_operand.vmem [shape: f32[16,18], index: 14, kind: input, shape index: {}]
  %s15 = inlined_call_operand.vmem [shape: f32[16,16], index: 15, kind: input, shape index: {}]
  %s16 = inlined_call_operand.vmem [shape: f32[18,18], index: 16, kind: input, shape index: {}]
  %s17 = inlined_call_operand.vmem [shape: f32[2,18], index: 17, kind: input, shape index: {}]
  %s18 = inlined_call_operand.vmem [shape: f32[18,2], index: 18, kind: input, shape index: {}]
  %s19 = inlined_call_operand.vmem [shape: f32[1,18], index: 19, kind: input, shape index: {}]
  %s20 = inlined_call_operand.vmem [shape: f32[4,128], index: 20, kind: input, shape index: {}]
  %s21 = inlined_call_operand.vmem [shape: f32[2,128], index: 21, kind: input, shape index: {}]
  %s22 = inlined_call_operand.vmem [shape: f32[2,128], index: 22, kind: input, shape index: {}]
  %s23 = inlined_call_operand.hbm [shape: f32[8,128], index: 23, kind: output, shape index: {}]
  %s24 = sld [smem:[#allocation0]]
  $region102: #{tpu_custom_call.1} parent=0
    _
  %s26 = ssub.s32 1, %s24
  %s27 = scalar_select 0, %s26, %s24
  $region1: #{tpu_custom_call.1} parent=0
    #allocation2 [shape = 'u8[4096]{0}', space=vmem, size = 0x1000, scoped, tag = 'output window, operand 0, single buffered']
    #allocation3 [shape = 's32[1]{0}', space=sflag, size = 0x4, scoped, tag = 'scoped memory for tpu_custom_call.1']
    %28 = vsyncpa [#allocation3], 0
    // Predicated region
    $region2: #{tpu_custom_call.1} parent=1 // pred_check
      _
    $region3: #{tpu_custom_call.1} parent=1 // pred_check_branch
      %30 = sbr.rel (0) target = $region5
    $region4: #{tpu_custom_call.1} parent=1 // pred_region
      _
    $region5: #{tpu_custom_call.1} parent=1 // pred_fallthru
      _
    // Predicated region
    $region6: #{tpu_custom_call.1} parent=1 // pred_check
      _
    $region7: #{tpu_custom_call.1} parent=1 // pred_check_branch
      %32 = sbr.rel (0) target = $region9
    $region8: #{tpu_custom_call.1} parent=1 // pred_region
      _
    $region9: #{tpu_custom_call.1} parent=1 // pred_fallthru
      _
    // Predicated region
    $region10: #{tpu_custom_call.1} parent=1 // pred_check
      _
    $region11: #{tpu_custom_call.1} parent=1 // pred_check_branch
      %34 = sbr.rel (0) target = $region13
    $region12: #{tpu_custom_call.1} parent=1 // pred_region
      _
    $region13: #{tpu_custom_call.1} parent=1 // pred_fallthru
      _
    // Predicated region
    $region14: #{tpu_custom_call.1} parent=1 // pred_check
      _
    $region15: #{tpu_custom_call.1} parent=1 // pred_check_branch
      %36 = sbr.rel (0) target = $region17
    $region16: #{tpu_custom_call.1} parent=1 // pred_region
      _
    $region17: #{tpu_custom_call.1} parent=1 // pred_fallthru
      _
    // Predicated region
    $region18: #{tpu_custom_call.1} parent=1 // pred_check
      _
    $region19: #{tpu_custom_call.1} parent=1 // pred_check_branch
      %38 = sbr.rel (0) target = $region21
    $region20: #{tpu_custom_call.1} parent=1 // pred_region
      _
    $region21: #{tpu_custom_call.1} parent=1 // pred_fallthru
      _
    // Predicated region
    $region22: #{tpu_custom_call.1} parent=1 // pred_check
      _
    $region23: #{tpu_custom_call.1} parent=1 // pred_check_branch
      %40 = sbr.rel (0) target = $region25
    $region24: #{tpu_custom_call.1} parent=1 // pred_region
      _
    $region25: #{tpu_custom_call.1} parent=1 // pred_fallthru
      _
    // Predicated region
    $region26: #{tpu_custom_call.1} parent=1 // pred_check
      _
    $region27: #{tpu_custom_call.1} parent=1 // pred_check_branch
      %42 = sbr.rel (0) target = $region29
    $region28: #{tpu_custom_call.1} parent=1 // pred_region
      _
    $region29: #{tpu_custom_call.1} parent=1 // pred_fallthru
      _
    // Predicated region
    $region30: #{tpu_custom_call.1} parent=1 // pred_check
      _
    $region31: #{tpu_custom_call.1} parent=1 // pred_check_branch
      %44 = sbr.rel (0) target = $region33
    $region32: #{tpu_custom_call.1} parent=1 // pred_region
      _
    $region33: #{tpu_custom_call.1} parent=1 // pred_fallthru
      _
    // Predicated region
    $region34: #{tpu_custom_call.1} parent=1 // pred_check
      _
    $region35: #{tpu_custom_call.1} parent=1 // pred_check_branch
      %46 = sbr.rel (0) target = $region37
    $region36: #{tpu_custom_call.1} parent=1 // pred_region
      _
    $region37: #{tpu_custom_call.1} parent=1 // pred_fallthru
      _
    // Predicated region
    $region38: #{tpu_custom_call.1} parent=1 // pred_check
      _
    $region39: #{tpu_custom_call.1} parent=1 // pred_check_branch
      %48 = sbr.rel (0) target = $region41
    $region40: #{tpu_custom_call.1} parent=1 // pred_region
      _
    $region41: #{tpu_custom_call.1} parent=1 // pred_fallthru
      _
    // Predicated region
    $region42: #{tpu_custom_call.1} parent=1 // pred_check
      _
    $region43: #{tpu_custom_call.1} parent=1 // pred_check_branch
      %50 = sbr.rel (0) target = $region45
    $region44: #{tpu_custom_call.1} parent=1 // pred_region
      _
    $region45: #{tpu_custom_call.1} parent=1 // pred_fallthru
      _
    // Predicated region
    $region46: #{tpu_custom_call.1} parent=1 // pred_check
      _
    $region47: #{tpu_custom_call.1} parent=1 // pred_check_branch
      %52 = sbr.rel (0) target = $region49
    $region48: #{tpu_custom_call.1} parent=1 // pred_region
      _
    $region49: #{tpu_custom_call.1} parent=1 // pred_fallthru
      _
    // Predicated region
    $region50: #{tpu_custom_call.1} parent=1 // pred_check
      _
    $region51: #{tpu_custom_call.1} parent=1 // pred_check_branch
      %54 = sbr.rel (0) target = $region53
    $region52: #{tpu_custom_call.1} parent=1 // pred_region
      _
    $region53: #{tpu_custom_call.1} parent=1 // pred_fallthru
      _
    // Predicated region
    $region54: #{tpu_custom_call.1} parent=1 // pred_check
      _
    $region55: #{tpu_custom_call.1} parent=1 // pred_check_branch
      %56 = sbr.rel (0) target = $region57
    $region56: #{tpu_custom_call.1} parent=1 // pred_region
      _
    $region57: #{tpu_custom_call.1} parent=1 // pred_fallthru
      _
    // Predicated region
    $region58: #{tpu_custom_call.1} parent=1 // pred_check
      _
    $region59: #{tpu_custom_call.1} parent=1 // pred_check_branch
      %58 = sbr.rel (0) target = $region61
    $region60: #{tpu_custom_call.1} parent=1 // pred_region
      _
    $region61: #{tpu_custom_call.1} parent=1 // pred_fallthru
      _
    // Predicated region
    $region62: #{tpu_custom_call.1} parent=1 // pred_check
      _
    $region63: #{tpu_custom_call.1} parent=1 // pred_check_branch
      %60 = sbr.rel (0) target = $region65
    $region64: #{tpu_custom_call.1} parent=1 // pred_region
      _
    $region65: #{tpu_custom_call.1} parent=1 // pred_fallthru
      _
    // Predicated region
    $region66: #{tpu_custom_call.1} parent=1 // pred_check
      _
    $region67: #{tpu_custom_call.1} parent=1 // pred_check_branch
      %62 = sbr.rel (0) target = $region69
    $region68: #{tpu_custom_call.1} parent=1 // pred_region
      _
    $region69: #{tpu_custom_call.1} parent=1 // pred_fallthru
      _
    // Predicated region
    $region70: #{tpu_custom_call.1} parent=1 // pred_check
      _
    $region71: #{tpu_custom_call.1} parent=1 // pred_check_branch
      %64 = sbr.rel (0) target = $region73
    $region72: #{tpu_custom_call.1} parent=1 // pred_region
      _
    $region73: #{tpu_custom_call.1} parent=1 // pred_fallthru
      _
    // Predicated region
    $region74: #{tpu_custom_call.1} parent=1 // pred_check
      _
    $region75: #{tpu_custom_call.1} parent=1 // pred_check_branch
      %66 = sbr.rel (0) target = $region77
    $region76: #{tpu_custom_call.1} parent=1 // pred_region
      _
    $region77: #{tpu_custom_call.1} parent=1 // pred_fallthru
      _
    // Predicated region
    $region78: #{tpu_custom_call.1} parent=1 // pred_check
      _
    $region79: #{tpu_custom_call.1} parent=1 // pred_check_branch
      %68 = sbr.rel (0) target = $region81
    $region80: #{tpu_custom_call.1} parent=1 // pred_region
      _
    $region81: #{tpu_custom_call.1} parent=1 // pred_fallthru
      _
    // Predicated region
    $region82: #{tpu_custom_call.1} parent=1 // pred_check
      _
    $region83: #{tpu_custom_call.1} parent=1 // pred_check_branch
      %70 = sbr.rel (0) target = $region85
    $region84: #{tpu_custom_call.1} parent=1 // pred_region
      _
    $region85: #{tpu_custom_call.1} parent=1 // pred_fallthru
      _
    // Predicated region
    $region86: #{tpu_custom_call.1} parent=1 // pred_check
      _
    $region87: #{tpu_custom_call.1} parent=1 // pred_check_branch
      %72 = sbr.rel (0) target = $region89
    $region88: #{tpu_custom_call.1} parent=1 // pred_region
      _
    $region89: #{tpu_custom_call.1} parent=1 // pred_fallthru
      _
    // Predicated region
    $region90: #{tpu_custom_call.1} parent=1 // pred_check
      _
    $region91: #{tpu_custom_call.1} parent=1 // pred_check_branch
      %74 = sbr.rel (0) target = $region93
    $region92: #{tpu_custom_call.1} parent=1 // pred_region
      _
    $region93: #{tpu_custom_call.1} parent=1 // pred_fallthru
      _
    %v75 = vld [vmem:[%s0] sm:$0xff]
    %v76 = vld [vmem:[%s1] sm:$0xff]
    %v77 = vld [vmem:[%s2] sm:$0xf]
    %vm78 = vcmask 31744
    %v80 = vsel %vm78, %v75, 0
    %vm82 = vcmask 1043456
    %v84 = vsel %vm82, %v77, 0
    %86 = vmatprep.subr.mxu0 0.0
    %87 = vmatpush1.msra.mxu0 %v84
    %88 = vmatprep.subr.mxu0 0.0
    %89 = vmatpush1.msra.mxu0 0.0
    %90 = vmatprep.subr.mxu0 0.0
    %91 = vmatpush1.msra.mxu0 0.0
    %92 = vmatprep.subr.mxu0 0.0
    %93 = vmatpush1.msra.mxu0 0.0
    %94 = vmatprep.subr.mxu0 0.0
    %95 = vmatpush1.msra.mxu0 0.0
    %96 = vmatprep.subr.mxu0 0.0
    %97 = vmatpush1.msra.mxu0 0.0
    %98 = vmatprep.subr.mxu0 0.0
    %99 = vmatpush1.msra.mxu0 0.0
    %100 = vmatprep.subr.mxu0 0.0
    %101 = vmatpush1.msra.mxu0 0.0
    %102 = vmatprep.subr.mxu0 0.0
    %103 = vmatpush1.msra.mxu0 0.0
    %104 = vmatprep.subr.mxu0 0.0
    %105 = vmatpush1.msra.mxu0 0.0
    %106 = vmatprep.subr.mxu0 0.0
    %107 = vmatpush1.msra.mxu0 0.0
    %108 = vmatprep.subr.mxu0 0.0
    %109 = vmatpush1.msra.mxu0 0.0
    %110 = vmatprep.subr.mxu0 0.0
    %111 = vmatpush1.msra.mxu0 0.0
    %112 = vmatprep.subr.mxu0 0.0
    %113 = vmatpush1.msra.mxu0 0.0
    %114 = vmatprep.subr.mxu0 0.0
    %115 = vmatpush1.msra.mxu0 0.0
    %116 = vmatprep.subr.mxu0 0.0
    %117 = vmatpush1.msra.mxu0 0.0
    %118 = vmatprep.subr.mxu0 0.0
    %119 = vmatpush1.msra.mxu0 0.0
    %120 = vmatprep.subr.mxu0 0.0
    %121 = vmatpush1.msra.mxu0 0.0
    %122 = vmatprep.subr.mxu0 0.0
    %123 = vmatpush1.msra.mxu0 0.0
    %124 = vmatprep.subr.mxu0 0.0
    %125 = vmatpush1.msra.mxu0 0.0
    %126 = vmatprep.subr.mxu0 0.0
    %127 = vmatpush1.msra.mxu0 0.0
    %128 = vmatprep.subr.mxu0 0.0
    %129 = vmatpush1.msra.mxu0 0.0
    %130 = vmatprep.subr.mxu0 0.0
    %131 = vmatpush1.msra.mxu0 0.0
    %132 = vmatprep.subr.mxu0 0.0
    %133 = vmatpush1.msra.mxu0 0.0
    %134 = vmatprep.subr.mxu0 0.0
    %135 = vmatpush1.msra.mxu0 0.0
    %136 = vmatprep.subr.mxu0 0.0
    %137 = vmatpush1.msra.mxu0 0.0
    %138 = vmatprep.subr.mxu0 0.0
    %139 = vmatpush1.msra.mxu0 0.0
    %140 = vmatprep.subr.mxu0 0.0
    %141 = vmatpush1.msra.mxu0 0.0
    %142 = vmatprep.subr.mxu0 0.0
    %143 = vmatpush1.msra.mxu0 0.0
    %144 = vmatprep.subr.mxu0 0.0
    %145 = vmatpush1.msra.mxu0 0.0
    %146 = vmatprep.subr.mxu0 0.0
    %147 = vmatpush1.msra.mxu0 0.0
    %148 = vmatprep.subr.mxu0 0.0
    %149 = vmatpush1.msra.mxu0 0.0
    %150 = vmatprep.mubr.f32.mxu0 0.0
    %151 = vmatmul.mubr.f32.gmra.mrb[0].mxu0 %v80
    %v152 = vpop.f32.mrb[0].mxu0
    %v153 = vadd.f32 0.0, %v152
    %v154 = vpop.f32.mrb[0].mxu0
    %155 = vdwg.mxu0
    %v156 = vand.u32 2147483647, %v153
    %vm157 = vcmp.le.f32.partialorder %v156, 0.7853982
    %vm158 = vcmp.lt.s32.totalorder %v153, 0
    %v159 = vand.u32 %v153, 2139095040
    %v160 = vshrl.u32 %v159, 23
    %v161 = vsub.s32 %v160, 127
    %v162 = vand.u32 2147483647, %v153
    %v163 = vand.u32 %v162, 8388607
    %v164 = vor.u32 %v163, 8388608
    %v165 = vsub.s32 0, %v164
    %v166 = vadd.s32 %v161, 1
    %vm167 = vcmp.gt.s32.totalorder %v166, 0
    %v168 = vsel %vm167, %v166, 0
    %v169 = vshrl.u32 %v168, 5
    %v170 = vand.u32 %v168, 31
    %v171 = vsub.s32 32, %v170
    %v172 = vshrl.u32 683565275, %v171
    %v173 = vshll.u32 683565275, %v170
    %v174 = vshrl.u32 2475754826, %v171
    %v175 = vor.u32 %v173, %v174
    %v176 = vshll.u32 2475754826, %v170
    %v177 = vshrl.u32 2131351028, %v171
    %v178 = vor.u32 %v176, %v177
    %v179 = vshll.u32 2131351028, %v170
    %v180 = vshrl.u32 2102212464, %v171
    %v181 = vor.u32 %v179, %v180
    %v182 = vshll.u32 2102212464, %v170
    %v183 = vshrl.u32 920167782, %v171
    %v184 = vor.u32 %v182, %v183
    %v185 = vshll.u32 920167782, %v170
    %v186 = vshrl.u32 1326507024, %v171
    %v187 = vor.u32 %v185, %v186
    %vm188 = vcmp.lt.s32.totalorder %v169, 1
    %vm189 = vcmp.lt.s32.totalorder %v169, 2
    %vm190 = vcmp.lt.s32.totalorder %v169, 3
    %vm191 = vcmp.lt.s32.totalorder %v169, 4
    %v192 = vsel %vm188, %v172, %v175
    %v193 = vsel %vm191, %v181, 2102212464
    %v194 = vsel %vm190, %v178, %v193
    %v195 = vsel %vm189, %v192, %v194
    %v196 = vsel %vm188, %v175, %v178
    %v197 = vsel %vm191, %v184, 920167782
    %v198 = vsel %vm190, %v181, %v197
    %v199 = vsel %vm189, %v196, %v198
    %v200 = vsel %vm188, %v178, %v181
    %v201 = vsel %vm191, %v187, 1326507024
    %v202 = vsel %vm190, %v184, %v201
    %v203 = vsel %vm189, %v200, %v202
    %v204 = vshll.u32 %v164, 8
    %v205 = vmul.u32.u64.compose %v204, %v203
    %v206 = vextract.low.u32 %v205
    %v207 = vextract.high.u32 %v205
    %v208 = vmul.u32.u64.compose %v204, %v199
    %v209 = vextract.low.u32 %v208
    %v210 = vextract.high.u32 %v208
    %v211 = vmul.u32 %v204, %v195
    %v212 = vadd.s32 %v207, %v209
    %vm213 = vc.u32 %v207, %v209
    %v214 = vadd.s32 %v210, 1
    %v215 = vsel %vm213, %v214, %v210
    %v216 = vadd.s32 %v211, %v215
    %v217 = vadd.s32 %v216, 536870912
    %v218 = vshrl.u32 %v217, 30
    %v219 = vshll.u32 %v218, 30
    %v220 = vsub.s32 %v216, %v219
    %vm221 = vcmp.lt.s32.totalorder %v220, 0
    %v222 = vsub.s32 0, %v220
    %v223 = vsel %vm221, %v222, %v220
    %v224 = vclz %v223
    %v225 = vsub.s32 %v224, 2
    %vm226 = vcmp.gt.s32.totalorder 0, %v225
    %v227 = vsel %vm226, 0, %v225
    %v228 = vsub.s32 32, %v227
    %v229 = vshll.u32 %v220, %v227
    %v230 = vshrl.u32 %v212, %v228
    %v231 = vor.u32 %v229, %v230
    %v232 = vsub.s32 4294967266, %v227
    %v233 = vadd.s32 %v232, 127
    %v234 = vshll.u32 %v233, 23
    %v235 = vor.u32 4788187, %v234
    %v236 = vand.u32 2147483647, %v235
    %v238 = vcvt.s32.f32 %v231
    %v239 = vmul.f32 %v238, %v236
    %v240 = vxor.u32 %v239, 2147483648
    %v241 = vsel %vm158, %v240, %v239
    %v242 = vsub.s32 4, %v218
    %v243 = vsel %vm158, %v242, %v218
    %v244 = vsel %vm157, %v153, %v241
    %v245 = vsel %vm157, 0, %v243
    %v246 = vcosq.f32.pop %v244
    %v247 = vsinq.f32.pop %v244
    %vm248 = vweird.f32 %v153
    %v249 = vadd.s32 %v245, 3
    %v250 = vand.u32 %v249, 3
    %vm251 = vcmp.lt.s32.totalorder %v250, 2
    %vm252 = vcmp.eq.s32.totalorder %v250, 0
    %v253 = vxor.u32 %v247, 2147483648
    %v254 = vsel %vm252, %v246, %v253
    %vm255 = vcmp.eq.s32.totalorder %v250, 2
    %v256 = vxor.u32 %v246, 2147483648
    %v257 = vsel %vm255, %v256, %v247
    %v258 = vsel %vm251, %v254, %v257
    %v259 = vsel %vm248, nan, %v258
    %v260 = vld [vmem:[%s3] sm:$0xff]
    %v261 = vand.u32 2147483647, %v153
    %vm262 = vcmp.le.f32.partialorder %v261, 0.7853982
    %vm263 = vcmp.lt.s32.totalorder %v153, 0
    %v264 = vand.u32 %v153, 2139095040
    %v265 = vshrl.u32 %v264, 23
    %v266 = vsub.s32 %v265, 127
    %v267 = vand.u32 2147483647, %v153
    %v268 = vand.u32 %v267, 8388607
    %v269 = vor.u32 %v268, 8388608
    %v270 = vsub.s32 0, %v269
    %v271 = vadd.s32 %v266, 1
    %vm272 = vcmp.gt.s32.totalorder %v271, 0
    %v273 = vsel %vm272, %v271, 0
    %v274 = vshrl.u32 %v273, 5
    %v275 = vand.u32 %v273, 31
    %v276 = vsub.s32 32, %v275
    %v277 = vshrl.u32 683565275, %v276
    %v278 = vshll.u32 683565275, %v275
    %v279 = vshrl.u32 2475754826, %v276
    %v280 = vor.u32 %v278, %v279
    %v281 = vshll.u32 2475754826, %v275
    %v282 = vshrl.u32 2131351028, %v276
    %v283 = vor.u32 %v281, %v282
    %v284 = vshll.u32 2131351028, %v275
    %v285 = vshrl.u32 2102212464, %v276
    %v286 = vor.u32 %v284, %v285
    %v287 = vshll.u32 2102212464, %v275
    %v288 = vshrl.u32 920167782, %v276
    %v289 = vor.u32 %v287, %v288
    %v290 = vshll.u32 920167782, %v275
    %v291 = vshrl.u32 1326507024, %v276
    %v292 = vor.u32 %v290, %v291
    %vm293 = vcmp.lt.s32.totalorder %v274, 1
    %vm294 = vcmp.lt.s32.totalorder %v274, 2
    %vm295 = vcmp.lt.s32.totalorder %v274, 3
    %vm296 = vcmp.lt.s32.totalorder %v274, 4
    %v297 = vsel %vm293, %v277, %v280
    %v298 = vsel %vm296, %v286, 2102212464
    %v299 = vsel %vm295, %v283, %v298
    %v300 = vsel %vm294, %v297, %v299
    %v301 = vsel %vm293, %v280, %v283
    %v302 = vsel %vm296, %v289, 920167782
    %v303 = vsel %vm295, %v286, %v302
    %v304 = vsel %vm294, %v301, %v303
    %v305 = vsel %vm293, %v283, %v286
    %v306 = vsel %vm296, %v292, 1326507024
    %v307 = vsel %vm295, %v289, %v306
    %v308 = vsel %vm294, %v305, %v307
    %v309 = vshll.u32 %v269, 8
    %v310 = vmul.u32.u64.compose %v309, %v308
    %v311 = vextract.low.u32 %v310
    %v312 = vextract.high.u32 %v310
    %v313 = vmul.u32.u64.compose %v309, %v304
    %v314 = vextract.low.u32 %v313
    %v315 = vextract.high.u32 %v313
    %v316 = vmul.u32 %v309, %v300
    %v317 = vadd.s32 %v312, %v314
    %vm318 = vc.u32 %v312, %v314
    %v319 = vadd.s32 %v315, 1
    %v320 = vsel %vm318, %v319, %v315
    %v321 = vadd.s32 %v316, %v320
    %v322 = vadd.s32 %v321, 536870912
    %v323 = vshrl.u32 %v322, 30
    %v324 = vshll.u32 %v323, 30
    %v325 = vsub.s32 %v321, %v324
    %vm326 = vcmp.lt.s32.totalorder %v325, 0
    %v327 = vsub.s32 0, %v325
    %v328 = vsel %vm326, %v327, %v325
    %v329 = vclz %v328
    %v330 = vsub.s32 %v329, 2
    %vm331 = vcmp.gt.s32.totalorder 0, %v330
    %v332 = vsel %vm331, 0, %v330
    %v333 = vsub.s32 32, %v332
    %v334 = vshll.u32 %v325, %v332
    %v335 = vshrl.u32 %v317, %v333
    %v336 = vor.u32 %v334, %v335
    %v337 = vsub.s32 4294967266, %v332
    %v338 = vadd.s32 %v337, 127
    %v339 = vshll.u32 %v338, 23
    %v340 = vor.u32 4788187, %v339
    %v341 = vand.u32 2147483647, %v340
    %v343 = vcvt.s32.f32 %v336
    %v344 = vmul.f32 %v343, %v341
    %v345 = vxor.u32 %v344, 2147483648
    %v346 = vsel %vm263, %v345, %v344
    %v347 = vsub.s32 4, %v323
    %v348 = vsel %vm263, %v347, %v323
    %v349 = vsel %vm262, %v153, %v346
    %v350 = vsel %vm262, 0, %v348
    %v351 = vcosq.f32.pop %v349
    %v352 = vsinq.f32.pop %v349
    %vm353 = vweird.f32 %v153
    %v354 = vand.u32 %v350, 3
    %vm355 = vcmp.lt.s32.totalorder %v354, 2
    %vm356 = vcmp.eq.s32.totalorder %v354, 0
    %v357 = vxor.u32 %v352, 2147483648
    %v358 = vsel %vm356, %v351, %v357
    %vm359 = vcmp.eq.s32.totalorder %v354, 2
    %v360 = vxor.u32 %v351, 2147483648
    %v361 = vsel %vm359, %v360, %v352
    %v362 = vsel %vm355, %v358, %v361
    %v363 = vsel %vm353, nan, %v362
    %v364 = vld [vmem:[%s4] sm:$0xff]
    %vm365 = vcmask 64512
    %v367 = vsel %vm365, %v363, 0
    %369 = vmatprep.subr.mxu0 0.0
    %370 = vmatpush1.msra.mxu0 %v364
    %371 = vmatprep.subr.mxu0 0.0
    %372 = vmatpush1.msra.mxu0 0.0
    %373 = vmatprep.subr.mxu0 0.0
    %374 = vmatpush1.msra.mxu0 0.0
    %375 = vmatprep.subr.mxu0 0.0
    %376 = vmatpush1.msra.mxu0 0.0
    %377 = vmatprep.subr.mxu0 0.0
    %378 = vmatpush1.msra.mxu0 0.0
    %379 = vmatprep.subr.mxu0 0.0
    %380 = vmatpush1.msra.mxu0 0.0
    %381 = vmatprep.subr.mxu0 0.0
    %382 = vmatpush1.msra.mxu0 0.0
    %383 = vmatprep.subr.mxu0 0.0
    %384 = vmatpush1.msra.mxu0 0.0
    %385 = vmatprep.subr.mxu0 0.0
    %386 = vmatpush1.msra.mxu0 0.0
    %387 = vmatprep.subr.mxu0 0.0
    %388 = vmatpush1.msra.mxu0 0.0
    %389 = vmatprep.subr.mxu0 0.0
    %390 = vmatpush1.msra.mxu0 0.0
    %391 = vmatprep.subr.mxu0 0.0
    %392 = vmatpush1.msra.mxu0 0.0
    %393 = vmatprep.subr.mxu0 0.0
    %394 = vmatpush1.msra.mxu0 0.0
    %395 = vmatprep.subr.mxu0 0.0
    %396 = vmatpush1.msra.mxu0 0.0
    %397 = vmatprep.subr.mxu0 0.0
    %398 = vmatpush1.msra.mxu0 0.0
    %399 = vmatprep.subr.mxu0 0.0
    %400 = vmatpush1.msra.mxu0 0.0
    %401 = vmatprep.subr.mxu0 0.0
    %402 = vmatpush1.msra.mxu0 0.0
    %403 = vmatprep.subr.mxu0 0.0
    %404 = vmatpush1.msra.mxu0 0.0
    %405 = vmatprep.subr.mxu0 0.0
    %406 = vmatpush1.msra.mxu0 0.0
    %407 = vmatprep.subr.mxu0 0.0
    %408 = vmatpush1.msra.mxu0 0.0
    %409 = vmatprep.subr.mxu0 0.0
    %410 = vmatpush1.msra.mxu0 0.0
    %411 = vmatprep.subr.mxu0 0.0
    %412 = vmatpush1.msra.mxu0 0.0
    %413 = vmatprep.subr.mxu0 0.0
    %414 = vmatpush1.msra.mxu0 0.0
    %415 = vmatprep.subr.mxu0 0.0
    %416 = vmatpush1.msra.mxu0 0.0
    %417 = vmatprep.subr.mxu0 0.0
    %418 = vmatpush1.msra.mxu0 0.0
    %419 = vmatprep.subr.mxu0 0.0
    %420 = vmatpush1.msra.mxu0 0.0
    %421 = vmatprep.subr.mxu0 0.0
    %422 = vmatpush1.msra.mxu0 0.0
    %423 = vmatprep.subr.mxu0 0.0
    %424 = vmatpush1.msra.mxu0 0.0
    %425 = vmatprep.subr.mxu0 0.0
    %426 = vmatpush1.msra.mxu0 0.0
    %427 = vmatprep.subr.mxu0 0.0
    %428 = vmatpush1.msra.mxu0 0.0
    %429 = vmatprep.subr.mxu0 0.0
    %430 = vmatpush1.msra.mxu0 0.0
    %431 = vmatprep.subr.mxu0 0.0
    %432 = vmatpush1.msra.mxu0 0.0
    %433 = vmatprep.mubr.f32.mxu0 0.0
    %434 = vmatmul.mubr.f32.gmra.mrb[0].mxu0 %v367
    %v435 = vpop.f32.mrb[0].mxu0
    %v436 = vadd.f32 0.0, %v435
    %v437 = vpop.f32.mrb[0].mxu0
    %438 = vdwg.mxu0
    %v440 = vsel %vm365, %v259, 0
    %442 = vmatprep.subr.mxu0 0.0
    %443 = vmatpush1.msra.mxu0 %v260
    %444 = vmatprep.subr.mxu0 0.0
    %445 = vmatpush1.msra.mxu0 0.0
    %446 = vmatprep.subr.mxu0 0.0
    %447 = vmatpush1.msra.mxu0 0.0
    %448 = vmatprep.subr.mxu0 0.0
    %449 = vmatpush1.msra.mxu0 0.0
    %450 = vmatprep.subr.mxu0 0.0
    %451 = vmatpush1.msra.mxu0 0.0
    %452 = vmatprep.subr.mxu0 0.0
    %453 = vmatpush1.msra.mxu0 0.0
    %454 = vmatprep.subr.mxu0 0.0
    %455 = vmatpush1.msra.mxu0 0.0
    %456 = vmatprep.subr.mxu0 0.0
    %457 = vmatpush1.msra.mxu0 0.0
    %458 = vmatprep.subr.mxu0 0.0
    %459 = vmatpush1.msra.mxu0 0.0
    %460 = vmatprep.subr.mxu0 0.0
    %461 = vmatpush1.msra.mxu0 0.0
    %462 = vmatprep.subr.mxu0 0.0
    %463 = vmatpush1.msra.mxu0 0.0
    %464 = vmatprep.subr.mxu0 0.0
    %465 = vmatpush1.msra.mxu0 0.0
    %466 = vmatprep.subr.mxu0 0.0
    %467 = vmatpush1.msra.mxu0 0.0
    %468 = vmatprep.subr.mxu0 0.0
    %469 = vmatpush1.msra.mxu0 0.0
    %470 = vmatprep.subr.mxu0 0.0
    %471 = vmatpush1.msra.mxu0 0.0
    %472 = vmatprep.subr.mxu0 0.0
    %473 = vmatpush1.msra.mxu0 0.0
    %474 = vmatprep.subr.mxu0 0.0
    %475 = vmatpush1.msra.mxu0 0.0
    %476 = vmatprep.subr.mxu0 0.0
    %477 = vmatpush1.msra.mxu0 0.0
    %478 = vmatprep.subr.mxu0 0.0
    %479 = vmatpush1.msra.mxu0 0.0
    %480 = vmatprep.subr.mxu0 0.0
    %481 = vmatpush1.msra.mxu0 0.0
    %482 = vmatprep.subr.mxu0 0.0
    %483 = vmatpush1.msra.mxu0 0.0
    %484 = vmatprep.subr.mxu0 0.0
    %485 = vmatpush1.msra.mxu0 0.0
    %486 = vmatprep.subr.mxu0 0.0
    %487 = vmatpush1.msra.mxu0 0.0
    %488 = vmatprep.subr.mxu0 0.0
    %489 = vmatpush1.msra.mxu0 0.0
    %490 = vmatprep.subr.mxu0 0.0
    %491 = vmatpush1.msra.mxu0 0.0
    %492 = vmatprep.subr.mxu0 0.0
    %493 = vmatpush1.msra.mxu0 0.0
    %494 = vmatprep.subr.mxu0 0.0
    %495 = vmatpush1.msra.mxu0 0.0
    %496 = vmatprep.subr.mxu0 0.0
    %497 = vmatpush1.msra.mxu0 0.0
    %498 = vmatprep.subr.mxu0 0.0
    %499 = vmatpush1.msra.mxu0 0.0
    %500 = vmatprep.subr.mxu0 0.0
    %501 = vmatpush1.msra.mxu0 0.0
    %502 = vmatprep.subr.mxu0 0.0
    %503 = vmatpush1.msra.mxu0 0.0
    %504 = vmatprep.subr.mxu0 0.0
    %505 = vmatpush1.msra.mxu0 0.0
    %506 = vmatprep.mubr.f32.mxu0 0.0
    %507 = vmatmul.mubr.f32.gmra.mrb[0].mxu0 %v440
    %v508 = vpop.f32.mrb[0].mxu0
    %v509 = vadd.f32 %v436, %v508
    %v510 = vpop.f32.mrb[0].mxu0
    %511 = vdwg.mxu0
    %v512 = vld [vmem:[%s5] sm:$0xff]
    %v514 = vsel %vm365, %v76, 0
    %516 = vmatprep.subr.mxu0 0.0
    %517 = vmatpush1.msra.mxu0 %v512
    %518 = vmatprep.subr.mxu0 0.0
    %519 = vmatpush1.msra.mxu0 0.0
    %520 = vmatprep.subr.mxu0 0.0
    %521 = vmatpush1.msra.mxu0 0.0
    %522 = vmatprep.subr.mxu0 0.0
    %523 = vmatpush1.msra.mxu0 0.0
    %524 = vmatprep.subr.mxu0 0.0
    %525 = vmatpush1.msra.mxu0 0.0
    %526 = vmatprep.subr.mxu0 0.0
    %527 = vmatpush1.msra.mxu0 0.0
    %528 = vmatprep.subr.mxu0 0.0
    %529 = vmatpush1.msra.mxu0 0.0
    %530 = vmatprep.subr.mxu0 0.0
    %531 = vmatpush1.msra.mxu0 0.0
    %532 = vmatprep.subr.mxu0 0.0
    %533 = vmatpush1.msra.mxu0 0.0
    %534 = vmatprep.subr.mxu0 0.0
    %535 = vmatpush1.msra.mxu0 0.0
    %536 = vmatprep.subr.mxu0 0.0
    %537 = vmatpush1.msra.mxu0 0.0
    %538 = vmatprep.subr.mxu0 0.0
    %539 = vmatpush1.msra.mxu0 0.0
    %540 = vmatprep.subr.mxu0 0.0
    %541 = vmatpush1.msra.mxu0 0.0
    %542 = vmatprep.subr.mxu0 0.0
    %543 = vmatpush1.msra.mxu0 0.0
    %544 = vmatprep.subr.mxu0 0.0
    %545 = vmatpush1.msra.mxu0 0.0
    %546 = vmatprep.subr.mxu0 0.0
    %547 = vmatpush1.msra.mxu0 0.0
    %548 = vmatprep.subr.mxu0 0.0
    %549 = vmatpush1.msra.mxu0 0.0
    %550 = vmatprep.subr.mxu0 0.0
    %551 = vmatpush1.msra.mxu0 0.0
    %552 = vmatprep.subr.mxu0 0.0
    %553 = vmatpush1.msra.mxu0 0.0
    %554 = vmatprep.subr.mxu0 0.0
    %555 = vmatpush1.msra.mxu0 0.0
    %556 = vmatprep.subr.mxu0 0.0
    %557 = vmatpush1.msra.mxu0 0.0
    %558 = vmatprep.subr.mxu0 0.0
    %559 = vmatpush1.msra.mxu0 0.0
    %560 = vmatprep.subr.mxu0 0.0
    %561 = vmatpush1.msra.mxu0 0.0
    %562 = vmatprep.subr.mxu0 0.0
    %563 = vmatpush1.msra.mxu0 0.0
    %564 = vmatprep.subr.mxu0 0.0
    %565 = vmatpush1.msra.mxu0 0.0
    %566 = vmatprep.subr.mxu0 0.0
    %567 = vmatpush1.msra.mxu0 0.0
    %568 = vmatprep.subr.mxu0 0.0
    %569 = vmatpush1.msra.mxu0 0.0
    %570 = vmatprep.subr.mxu0 0.0
    %571 = vmatpush1.msra.mxu0 0.0
    %572 = vmatprep.subr.mxu0 0.0
    %573 = vmatpush1.msra.mxu0 0.0
    %574 = vmatprep.subr.mxu0 0.0
    %575 = vmatpush1.msra.mxu0 0.0
    %576 = vmatprep.subr.mxu0 0.0
    %577 = vmatpush1.msra.mxu0 0.0
    %578 = vmatprep.subr.mxu0 0.0
    %579 = vmatpush1.msra.mxu0 0.0
    %580 = vmatprep.mubr.f32.mxu0 0.0
    %581 = vmatmul.mubr.f32.gmra.mrb[0].mxu0 %v514
    %v582 = vpop.f32.mrb[0].mxu0
    %v583 = vadd.f32 0.0, %v582
    %v584 = vpop.f32.mrb[0].mxu0
    %585 = vdwg.mxu0
    %v586 = vadd.f32 %v509, %v583
    %v587 = vld [vmem:[%s6] sm:$0x1]
    %v589 = vlaneseq
    %v590 = vshrl.u32 %v589, 7
    %v591 = vsub.s32 0, %v590
    %v592 = vrot.slane %v587, %v591
    %v594 = vadd.f32 %v586, %v592
    %v595 = vmax.f32 %v594, 0.0
    %v596 = vld [vmem:[%s7] sm:$0xff]
    %v597 = vld [vmem:[%s7 + $0x8] sm:$0xff]
    %v598 = vld [vmem:[%s7 + $0x10] sm:$0xff]
    %v599 = vld [vmem:[%s7 + $0x18] sm:$0xff]
    %v600 = vld [vmem:[%s8] sm:$0x1]
    %v602 = vlaneseq
    %v603 = vshrl.u32 %v602, 7
    %v604 = vsub.s32 0, %v603
    %v605 = vrot.slane %v600, %v604
    %vm607 = vcmask 261120
    %v609 = vsel %vm607, %v595, 0
    %611 = vmatprep.subr.mxu0 0.0
    %612 = vmatpush1.msra.mxu0 %v596
    %613 = vmatprep.subr.mxu0 0.0
    %614 = vmatpush1.msra.mxu0 %v597
    %615 = vmatprep.subr.mxu0 0.0
    %616 = vmatpush1.msra.mxu0 %v598
    %617 = vmatprep.subr.mxu0 0.0
    %618 = vmatpush1.msra.mxu0 %v599
    %619 = vmatprep.subr.mxu0 0.0
    %620 = vmatpush1.msra.mxu0 0.0
    %621 = vmatprep.subr.mxu0 0.0
    %622 = vmatpush1.msra.mxu0 0.0
    %623 = vmatprep.subr.mxu0 0.0
    %624 = vmatpush1.msra.mxu0 0.0
    %625 = vmatprep.subr.mxu0 0.0
    %626 = vmatpush1.msra.mxu0 0.0
    %627 = vmatprep.subr.mxu0 0.0
    %628 = vmatpush1.msra.mxu0 0.0
    %629 = vmatprep.subr.mxu0 0.0
    %630 = vmatpush1.msra.mxu0 0.0
    %631 = vmatprep.subr.mxu0 0.0
    %632 = vmatpush1.msra.mxu0 0.0
    %633 = vmatprep.subr.mxu0 0.0
    %634 = vmatpush1.msra.mxu0 0.0
    %635 = vmatprep.subr.mxu0 0.0
    %636 = vmatpush1.msra.mxu0 0.0
    %637 = vmatprep.subr.mxu0 0.0
    %638 = vmatpush1.msra.mxu0 0.0
    %639 = vmatprep.subr.mxu0 0.0
    %640 = vmatpush1.msra.mxu0 0.0
    %641 = vmatprep.subr.mxu0 0.0
    %642 = vmatpush1.msra.mxu0 0.0
    %643 = vmatprep.subr.mxu0 0.0
    %644 = vmatpush1.msra.mxu0 0.0
    %645 = vmatprep.subr.mxu0 0.0
    %646 = vmatpush1.msra.mxu0 0.0
    %647 = vmatprep.subr.mxu0 0.0
    %648 = vmatpush1.msra.mxu0 0.0
    %649 = vmatprep.subr.mxu0 0.0
    %650 = vmatpush1.msra.mxu0 0.0
    %651 = vmatprep.subr.mxu0 0.0
    %652 = vmatpush1.msra.mxu0 0.0
    %653 = vmatprep.subr.mxu0 0.0
    %654 = vmatpush1.msra.mxu0 0.0
    %655 = vmatprep.subr.mxu0 0.0
    %656 = vmatpush1.msra.mxu0 0.0
    %657 = vmatprep.subr.mxu0 0.0
    %658 = vmatpush1.msra.mxu0 0.0
    %659 = vmatprep.subr.mxu0 0.0
    %660 = vmatpush1.msra.mxu0 0.0
    %661 = vmatprep.subr.mxu0 0.0
    %662 = vmatpush1.msra.mxu0 0.0
    %663 = vmatprep.subr.mxu0 0.0
    %664 = vmatpush1.msra.mxu0 0.0
    %665 = vmatprep.subr.mxu0 0.0
    %666 = vmatpush1.msra.mxu0 0.0
    %667 = vmatprep.subr.mxu0 0.0
    %668 = vmatpush1.msra.mxu0 0.0
    %669 = vmatprep.subr.mxu0 0.0
    %670 = vmatpush1.msra.mxu0 0.0
    %671 = vmatprep.subr.mxu0 0.0
    %672 = vmatpush1.msra.mxu0 0.0
    %673 = vmatprep.subr.mxu0 0.0
    %674 = vmatpush1.msra.mxu0 0.0
    %675 = vmatprep.mubr.f32.mxu0 0.0
    %676 = vmatmul.mubr.f32.gmra.mrb[0].mxu0 %v609
    %v677 = vpop.f32.mrb[0].mxu0
    %v678 = vadd.f32 %v605, %v677
    %v679 = vpop.f32.mrb[0].mxu0
    %680 = vdwg.mxu0
    %v681 = vld [vmem:[%s9] sm:$0xff]
    %v682 = vld [vmem:[%s9 + $0x8] sm:$0xff]
    %v683 = vld [vmem:[%s9 + $0x10] sm:$0xff]
    %v684 = vld [vmem:[%s9 + $0x18] sm:$0xff]
    %v685 = vld [vmem:[%s10] sm:$0x1]
    %v687 = vlaneseq
    %v688 = vshrl.u32 %v687, 7
    %v689 = vsub.s32 0, %v688
    %v690 = vrot.slane %v685, %v689
    %692 = vmatprep.subr.mxu0 0.0
    %693 = vmatpush1.msra.mxu0 %v681
    %694 = vmatprep.subr.mxu0 0.0
    %695 = vmatpush1.msra.mxu0 %v682
    %696 = vmatprep.subr.mxu0 0.0
    %697 = vmatpush1.msra.mxu0 %v683
    %698 = vmatprep.subr.mxu0 0.0
    %699 = vmatpush1.msra.mxu0 %v684
    %700 = vmatprep.subr.mxu0 0.0
    %701 = vmatpush1.msra.mxu0 0.0
    %702 = vmatprep.subr.mxu0 0.0
    %703 = vmatpush1.msra.mxu0 0.0
    %704 = vmatprep.subr.mxu0 0.0
    %705 = vmatpush1.msra.mxu0 0.0
    %706 = vmatprep.subr.mxu0 0.0
    %707 = vmatpush1.msra.mxu0 0.0
    %708 = vmatprep.subr.mxu0 0.0
    %709 = vmatpush1.msra.mxu0 0.0
    %710 = vmatprep.subr.mxu0 0.0
    %711 = vmatpush1.msra.mxu0 0.0
    %712 = vmatprep.subr.mxu0 0.0
    %713 = vmatpush1.msra.mxu0 0.0
    %714 = vmatprep.subr.mxu0 0.0
    %715 = vmatpush1.msra.mxu0 0.0
    %716 = vmatprep.subr.mxu0 0.0
    %717 = vmatpush1.msra.mxu0 0.0
    %718 = vmatprep.subr.mxu0 0.0
    %719 = vmatpush1.msra.mxu0 0.0
    %720 = vmatprep.subr.mxu0 0.0
    %721 = vmatpush1.msra.mxu0 0.0
    %722 = vmatprep.subr.mxu0 0.0
    %723 = vmatpush1.msra.mxu0 0.0
    %724 = vmatprep.subr.mxu0 0.0
    %725 = vmatpush1.msra.mxu0 0.0
    %726 = vmatprep.subr.mxu0 0.0
    %727 = vmatpush1.msra.mxu0 0.0
    %728 = vmatprep.subr.mxu0 0.0
    %729 = vmatpush1.msra.mxu0 0.0
    %730 = vmatprep.subr.mxu0 0.0
    %731 = vmatpush1.msra.mxu0 0.0
    %732 = vmatprep.subr.mxu0 0.0
    %733 = vmatpush1.msra.mxu0 0.0
    %734 = vmatprep.subr.mxu0 0.0
    %735 = vmatpush1.msra.mxu0 0.0
    %736 = vmatprep.subr.mxu0 0.0
    %737 = vmatpush1.msra.mxu0 0.0
    %738 = vmatprep.subr.mxu0 0.0
    %739 = vmatpush1.msra.mxu0 0.0
    %740 = vmatprep.subr.mxu0 0.0
    %741 = vmatpush1.msra.mxu0 0.0
    %742 = vmatprep.subr.mxu0 0.0
    %743 = vmatpush1.msra.mxu0 0.0
    %744 = vmatprep.subr.mxu0 0.0
    %745 = vmatpush1.msra.mxu0 0.0
    %746 = vmatprep.subr.mxu0 0.0
    %747 = vmatpush1.msra.mxu0 0.0
    %748 = vmatprep.subr.mxu0 0.0
    %749 = vmatpush1.msra.mxu0 0.0
    %750 = vmatprep.subr.mxu0 0.0
    %751 = vmatpush1.msra.mxu0 0.0
    %752 = vmatprep.subr.mxu0 0.0
    %753 = vmatpush1.msra.mxu0 0.0
    %754 = vmatprep.subr.mxu0 0.0
    %755 = vmatpush1.msra.mxu0 0.0
    %756 = vmatprep.mubr.f32.mxu0 0.0
    %757 = vmatmul.mubr.f32.gmra.mrb[0].mxu0 %v609
    %v758 = vpop.f32.mrb[0].mxu0
    %v759 = vadd.f32 %v690, %v758
    %v760 = vpop.f32.mrb[0].mxu0
    %761 = vdwg.mxu0
    %v762 = vld [vmem:[%s11] sm:$0xff]
    %v763 = vld [vmem:[%s11 + $0x8] sm:$0xff]
    %v764 = vld [vmem:[%s11 + $0x10] sm:$0xff]
    %v765 = vld [vmem:[%s11 + $0x18] sm:$0xff]
    %v766 = vld [vmem:[%s12] sm:$0x1]
    %v768 = vlaneseq
    %v769 = vshrl.u32 %v768, 7
    %v770 = vsub.s32 0, %v769
    %v771 = vrot.slane %v766, %v770
    %773 = vmatprep.subr.mxu0 0.0
    %774 = vmatpush1.msra.mxu0 %v762
    %775 = vmatprep.subr.mxu0 0.0
    %776 = vmatpush1.msra.mxu0 %v763
    %777 = vmatprep.subr.mxu0 0.0
    %778 = vmatpush1.msra.mxu0 %v764
    %779 = vmatprep.subr.mxu0 0.0
    %780 = vmatpush1.msra.mxu0 %v765
    %781 = vmatprep.subr.mxu0 0.0
    %782 = vmatpush1.msra.mxu0 0.0
    %783 = vmatprep.subr.mxu0 0.0
    %784 = vmatpush1.msra.mxu0 0.0
    %785 = vmatprep.subr.mxu0 0.0
    %786 = vmatpush1.msra.mxu0 0.0
    %787 = vmatprep.subr.mxu0 0.0
    %788 = vmatpush1.msra.mxu0 0.0
    %789 = vmatprep.subr.mxu0 0.0
    %790 = vmatpush1.msra.mxu0 0.0
    %791 = vmatprep.subr.mxu0 0.0
    %792 = vmatpush1.msra.mxu0 0.0
    %793 = vmatprep.subr.mxu0 0.0
    %794 = vmatpush1.msra.mxu0 0.0
    %795 = vmatprep.subr.mxu0 0.0
    %796 = vmatpush1.msra.mxu0 0.0
    %797 = vmatprep.subr.mxu0 0.0
    %798 = vmatpush1.msra.mxu0 0.0
    %799 = vmatprep.subr.mxu0 0.0
    %800 = vmatpush1.msra.mxu0 0.0
    %801 = vmatprep.subr.mxu0 0.0
    %802 = vmatpush1.msra.mxu0 0.0
    %803 = vmatprep.subr.mxu0 0.0
    %804 = vmatpush1.msra.mxu0 0.0
    %805 = vmatprep.subr.mxu0 0.0
    %806 = vmatpush1.msra.mxu0 0.0
    %807 = vmatprep.subr.mxu0 0.0
    %808 = vmatpush1.msra.mxu0 0.0
    %809 = vmatprep.subr.mxu0 0.0
    %810 = vmatpush1.msra.mxu0 0.0
    %811 = vmatprep.subr.mxu0 0.0
    %812 = vmatpush1.msra.mxu0 0.0
    %813 = vmatprep.subr.mxu0 0.0
    %814 = vmatpush1.msra.mxu0 0.0
    %815 = vmatprep.subr.mxu0 0.0
    %816 = vmatpush1.msra.mxu0 0.0
    %817 = vmatprep.subr.mxu0 0.0
    %818 = vmatpush1.msra.mxu0 0.0
    %819 = vmatprep.subr.mxu0 0.0
    %820 = vmatpush1.msra.mxu0 0.0
    %821 = vmatprep.subr.mxu0 0.0
    %822 = vmatpush1.msra.mxu0 0.0
    %823 = vmatprep.subr.mxu0 0.0
    %824 = vmatpush1.msra.mxu0 0.0
    %825 = vmatprep.subr.mxu0 0.0
    %826 = vmatpush1.msra.mxu0 0.0
    %827 = vmatprep.subr.mxu0 0.0
    %828 = vmatpush1.msra.mxu0 0.0
    %829 = vmatprep.subr.mxu0 0.0
    %830 = vmatpush1.msra.mxu0 0.0
    %831 = vmatprep.subr.mxu0 0.0
    %832 = vmatpush1.msra.mxu0 0.0
    %833 = vmatprep.subr.mxu0 0.0
    %834 = vmatpush1.msra.mxu0 0.0
    %835 = vmatprep.subr.mxu0 0.0
    %836 = vmatpush1.msra.mxu0 0.0
    %837 = vmatprep.mubr.f32.mxu0 0.0
    %838 = vmatmul.mubr.f32.gmra.mrb[0].mxu0 %v609
    %v839 = vpop.f32.mrb[0].mxu0
    %v840 = vadd.f32 %v771, %v839
    %v841 = vpop.f32.mrb[0].mxu0
    %842 = vdwg.mxu0
    %v843 = vld [vmem:[%s13] sm:$0xf]
    %v845 = vsel %vm82, %v843, 0
    %847 = vmatprep.subr.mxu0 0.0
    %848 = vmatpush1.msra.mxu0 %v845
    %849 = vmatprep.subr.mxu0 0.0
    %850 = vmatpush1.msra.mxu0 0.0
    %851 = vmatprep.subr.mxu0 0.0
    %852 = vmatpush1.msra.mxu0 0.0
    %853 = vmatprep.subr.mxu0 0.0
    %854 = vmatpush1.msra.mxu0 0.0
    %855 = vmatprep.subr.mxu0 0.0
    %856 = vmatpush1.msra.mxu0 0.0
    %857 = vmatprep.subr.mxu0 0.0
    %858 = vmatpush1.msra.mxu0 0.0
    %859 = vmatprep.subr.mxu0 0.0
    %860 = vmatpush1.msra.mxu0 0.0
    %861 = vmatprep.subr.mxu0 0.0
    %862 = vmatpush1.msra.mxu0 0.0
    %863 = vmatprep.subr.mxu0 0.0
    %864 = vmatpush1.msra.mxu0 0.0
    %865 = vmatprep.subr.mxu0 0.0
    %866 = vmatpush1.msra.mxu0 0.0
    %867 = vmatprep.subr.mxu0 0.0
    %868 = vmatpush1.msra.mxu0 0.0
    %869 = vmatprep.subr.mxu0 0.0
    %870 = vmatpush1.msra.mxu0 0.0
    %871 = vmatprep.subr.mxu0 0.0
    %872 = vmatpush1.msra.mxu0 0.0
    %873 = vmatprep.subr.mxu0 0.0
    %874 = vmatpush1.msra.mxu0 0.0
    %875 = vmatprep.subr.mxu0 0.0
    %876 = vmatpush1.msra.mxu0 0.0
    %877 = vmatprep.subr.mxu0 0.0
    %878 = vmatpush1.msra.mxu0 0.0
    %879 = vmatprep.subr.mxu0 0.0
    %880 = vmatpush1.msra.mxu0 0.0
    %881 = vmatprep.subr.mxu0 0.0
    %882 = vmatpush1.msra.mxu0 0.0
    %883 = vmatprep.subr.mxu0 0.0
    %884 = vmatpush1.msra.mxu0 0.0
    %885 = vmatprep.subr.mxu0 0.0
    %886 = vmatpush1.msra.mxu0 0.0
    %887 = vmatprep.subr.mxu0 0.0
    %888 = vmatpush1.msra.mxu0 0.0
    %889 = vmatprep.subr.mxu0 0.0
    %890 = vmatpush1.msra.mxu0 0.0
    %891 = vmatprep.subr.mxu0 0.0
    %892 = vmatpush1.msra.mxu0 0.0
    %893 = vmatprep.subr.mxu0 0.0
    %894 = vmatpush1.msra.mxu0 0.0
    %895 = vmatprep.subr.mxu0 0.0
    %896 = vmatpush1.msra.mxu0 0.0
    %897 = vmatprep.subr.mxu0 0.0
    %898 = vmatpush1.msra.mxu0 0.0
    %899 = vmatprep.subr.mxu0 0.0
    %900 = vmatpush1.msra.mxu0 0.0
    %901 = vmatprep.subr.mxu0 0.0
    %902 = vmatpush1.msra.mxu0 0.0
    %903 = vmatprep.subr.mxu0 0.0
    %904 = vmatpush1.msra.mxu0 0.0
    %905 = vmatprep.subr.mxu0 0.0
    %906 = vmatpush1.msra.mxu0 0.0
    %907 = vmatprep.subr.mxu0 0.0
    %908 = vmatpush1.msra.mxu0 0.0
    %909 = vmatprep.subr.mxu0 0.0
    %910 = vmatpush1.msra.mxu0 0.0
    %911 = vmatprep.mubr.f32.mxu0 0.0
    %912 = vmatmul.mubr.f32.gmra.mrb[0].mxu0 %v80
    %v913 = vpop.f32.mrb[0].mxu0
    %v914 = vadd.f32 0.0, %v913
    %v915 = vpop.f32.mrb[0].mxu0
    %916 = vdwg.mxu0
    %vm917 = vcmp.ge.f32.partialorder %v914, -1.0
    %vm918 = vcmp.le.f32.partialorder %v914, 1.0
    %vm919 = vmand %vm917, %vm918
    %v920 = vsel %vm919, 1, 0
    %v921 = vcvt.s32.f32 %v920
    %v922 = vmax.f32 %v914, -1.0
    %v923 = vmin.f32 %v922, 1.0
    %v924 = vld [vmem:[%s19] sm:$0x1]
    %v925 = vsub.f32 1.0, %v924
    %v926 = vld [vmem:[%s15] sm:$0xff]
    %v927 = vld [vmem:[%s15 + $0x8] sm:$0xff]
    %v928 = vld [vmem:[%s14] sm:$0xff]
    %v929 = vld [vmem:[%s14 + $0x8] sm:$0xff]
    %v930 = vld [vmem:[%s16] sm:$0xff]
    %v931 = vld [vmem:[%s16 + $0x8] sm:$0xff]
    %v932 = vld [vmem:[%s16 + $0x10] sm:$0x3]
    %vm933 = vcmask 130048
    %v934 = vsel %vm933, %v678, -inf
    %935 = vmax.xlane.f32.xlu0 %v934
    %v936 = vpop.xlane.xlu0 %935
    %v937 = vsub.f32 %v678, %v936
    %v938 = vmul.f32 %v937, 1.442695
    %v939 = vpow.pop %v938
    %v941 = vsel %vm933, %v939, 0
    %943 = vmatprep.subr.mxu0 0.0
    %944 = vmatpush1.msra.mxu0 %v926
    %945 = vmatprep.subr.mxu0 0.0
    %946 = vmatpush1.msra.mxu0 %v927
    %947 = vmatprep.subr.mxu0 0.0
    %948 = vmatpush1.msra.mxu0 0.0
    %949 = vmatprep.subr.mxu0 0.0
    %950 = vmatpush1.msra.mxu0 0.0
    %951 = vmatprep.subr.mxu0 0.0
    %952 = vmatpush1.msra.mxu0 0.0
    %953 = vmatprep.subr.mxu0 0.0
    %954 = vmatpush1.msra.mxu0 0.0
    %955 = vmatprep.subr.mxu0 0.0
    %956 = vmatpush1.msra.mxu0 0.0
    %957 = vmatprep.subr.mxu0 0.0
    %958 = vmatpush1.msra.mxu0 0.0
    %959 = vmatprep.subr.mxu0 0.0
    %960 = vmatpush1.msra.mxu0 0.0
    %961 = vmatprep.subr.mxu0 0.0
    %962 = vmatpush1.msra.mxu0 0.0
    %963 = vmatprep.subr.mxu0 0.0
    %964 = vmatpush1.msra.mxu0 0.0
    %965 = vmatprep.subr.mxu0 0.0
    %966 = vmatpush1.msra.mxu0 0.0
    %967 = vmatprep.subr.mxu0 0.0
    %968 = vmatpush1.msra.mxu0 0.0
    %969 = vmatprep.subr.mxu0 0.0
    %970 = vmatpush1.msra.mxu0 0.0
    %971 = vmatprep.subr.mxu0 0.0
    %972 = vmatpush1.msra.mxu0 0.0
    %973 = vmatprep.subr.mxu0 0.0
    %974 = vmatpush1.msra.mxu0 0.0
    %975 = vmatprep.subr.mxu0 0.0
    %976 = vmatpush1.msra.mxu0 0.0
    %977 = vmatprep.subr.mxu0 0.0
    %978 = vmatpush1.msra.mxu0 0.0
    %979 = vmatprep.subr.mxu0 0.0
    %980 = vmatpush1.msra.mxu0 0.0
    %981 = vmatprep.subr.mxu0 0.0
    %982 = vmatpush1.msra.mxu0 0.0
    %983 = vmatprep.subr.mxu0 0.0
    %984 = vmatpush1.msra.mxu0 0.0
    %985 = vmatprep.subr.mxu0 0.0
    %986 = vmatpush1.msra.mxu0 0.0
    %987 = vmatprep.subr.mxu0 0.0
    %988 = vmatpush1.msra.mxu0 0.0
    %989 = vmatprep.subr.mxu0 0.0
    %990 = vmatpush1.msra.mxu0 0.0
    %991 = vmatprep.subr.mxu0 0.0
    %992 = vmatpush1.msra.mxu0 0.0
    %993 = vmatprep.subr.mxu0 0.0
    %994 = vmatpush1.msra.mxu0 0.0
    %995 = vmatprep.subr.mxu0 0.0
    %996 = vmatpush1.msra.mxu0 0.0
    %997 = vmatprep.subr.mxu0 0.0
    %998 = vmatpush1.msra.mxu0 0.0
    %999 = vmatprep.subr.mxu0 0.0
    %1000 = vmatpush1.msra.mxu0 0.0
    %1001 = vmatprep.subr.mxu0 0.0
    %1002 = vmatpush1.msra.mxu0 0.0
    %1003 = vmatprep.subr.mxu0 0.0
    %1004 = vmatpush1.msra.mxu0 0.0
    %1005 = vmatprep.subr.mxu0 0.0
    %1006 = vmatpush1.msra.mxu0 0.0
    %1007 = vmatprep.mubr.f32.mxu0 0.0
    %1008 = vmatmul.mubr.f32.gmra.mrb[0].mxu0 %v941
    %v1009 = vpop.f32.mrb[0].mxu0
    %v1010 = vadd.f32 0.0, %v1009
    %v1011 = vpop.f32.mrb[0].mxu0
    %1012 = vdwg.mxu0
    %v1013 = vrcp.pop %v1010
    %v1014 = vmul.f32 %v939, %v1013
    %v1015 = vmul.f32 %v1014, 0.992
    %v1016 = vadd.f32 %v1015, 0.001
    %v1018 = vsel %vm933, %v1016, 0
    %1020 = vmatprep.subr.mxu0 0.0
    %1021 = vmatpush1.msra.mxu0 %v928
    %1022 = vmatprep.subr.mxu0 0.0
    %1023 = vmatpush1.msra.mxu0 %v929
    %1024 = vmatprep.subr.mxu0 0.0
    %1025 = vmatpush1.msra.mxu0 0.0
    %1026 = vmatprep.subr.mxu0 0.0
    %1027 = vmatpush1.msra.mxu0 0.0
    %1028 = vmatprep.subr.mxu0 0.0
    %1029 = vmatpush1.msra.mxu0 0.0
    %1030 = vmatprep.subr.mxu0 0.0
    %1031 = vmatpush1.msra.mxu0 0.0
    %1032 = vmatprep.subr.mxu0 0.0
    %1033 = vmatpush1.msra.mxu0 0.0
    %1034 = vmatprep.subr.mxu0 0.0
    %1035 = vmatpush1.msra.mxu0 0.0
    %1036 = vmatprep.subr.mxu0 0.0
    %1037 = vmatpush1.msra.mxu0 0.0
    %1038 = vmatprep.subr.mxu0 0.0
    %1039 = vmatpush1.msra.mxu0 0.0
    %1040 = vmatprep.subr.mxu0 0.0
    %1041 = vmatpush1.msra.mxu0 0.0
    %1042 = vmatprep.subr.mxu0 0.0
    %1043 = vmatpush1.msra.mxu0 0.0
    %1044 = vmatprep.subr.mxu0 0.0
    %1045 = vmatpush1.msra.mxu0 0.0
    %1046 = vmatprep.subr.mxu0 0.0
    %1047 = vmatpush1.msra.mxu0 0.0
    %1048 = vmatprep.subr.mxu0 0.0
    %1049 = vmatpush1.msra.mxu0 0.0
    %1050 = vmatprep.subr.mxu0 0.0
    %1051 = vmatpush1.msra.mxu0 0.0
    %1052 = vmatprep.subr.mxu0 0.0
    %1053 = vmatpush1.msra.mxu0 0.0
    %1054 = vmatprep.subr.mxu0 0.0
    %1055 = vmatpush1.msra.mxu0 0.0
    %1056 = vmatprep.subr.mxu0 0.0
    %1057 = vmatpush1.msra.mxu0 0.0
    %1058 = vmatprep.subr.mxu0 0.0
    %1059 = vmatpush1.msra.mxu0 0.0
    %1060 = vmatprep.subr.mxu0 0.0
    %1061 = vmatpush1.msra.mxu0 0.0
    %1062 = vmatprep.subr.mxu0 0.0
    %1063 = vmatpush1.msra.mxu0 0.0
    %1064 = vmatprep.subr.mxu0 0.0
    %1065 = vmatpush1.msra.mxu0 0.0
    %1066 = vmatprep.subr.mxu0 0.0
    %1067 = vmatpush1.msra.mxu0 0.0
    %1068 = vmatprep.subr.mxu0 0.0
    %1069 = vmatpush1.msra.mxu0 0.0
    %1070 = vmatprep.subr.mxu0 0.0
    %1071 = vmatpush1.msra.mxu0 0.0
    %1072 = vmatprep.subr.mxu0 0.0
    %1073 = vmatpush1.msra.mxu0 0.0
    %1074 = vmatprep.subr.mxu0 0.0
    %1075 = vmatpush1.msra.mxu0 0.0
    %1076 = vmatprep.subr.mxu0 0.0
    %1077 = vmatpush1.msra.mxu0 0.0
    %1078 = vmatprep.subr.mxu0 0.0
    %1079 = vmatpush1.msra.mxu0 0.0
    %1080 = vmatprep.subr.mxu0 0.0
    %1081 = vmatpush1.msra.mxu0 0.0
    %1082 = vmatprep.subr.mxu0 0.0
    %1083 = vmatpush1.msra.mxu0 0.0
    %1084 = vmatprep.mubr.f32.mxu0 0.0
    %1085 = vmatmul.mubr.f32.gmra.mrb[0].mxu0 %v1018
    %v1086 = vpop.f32.mrb[0].mxu0
    %v1087 = vadd.f32 0.0, %v1086
    %v1088 = vpop.f32.mrb[0].mxu0
    %1089 = vdwg.mxu0
    %v1090 = vmul.f32 %v1087, 2.0
    %v1091 = vsub.f32 %v1090, 1.0
    %v1093 = vlaneseq
    %v1094 = vshrl.u32 %v1093, 7
    %v1095 = vsub.s32 0, %v1094
    %v1096 = vrot.slane %v925, %v1095
    %v1098 = vmul.f32 %v1091, %v1096
    %v1100 = vlaneseq
    %v1101 = vshrl.u32 %v1100, 7
    %v1102 = vsub.s32 0, %v1101
    %v1103 = vrot.slane %v924, %v1102
    %v1105 = vadd.f32 %v1098, %v1103
    %v1106 = vsel %vm933, %v759, -inf
    %1107 = vmax.xlane.f32.xlu0 %v1106
    %v1108 = vpop.xlane.xlu0 %1107
    %v1109 = vsub.f32 %v759, %v1108
    %v1110 = vmul.f32 %v1109, 1.442695
    %v1111 = vpow.pop %v1110
    %v1113 = vsel %vm933, %v1111, 0
    %1115 = vmatprep.subr.mxu0 0.0
    %1116 = vmatpush1.msra.mxu0 %v926
    %1117 = vmatprep.subr.mxu0 0.0
    %1118 = vmatpush1.msra.mxu0 %v927
    %1119 = vmatprep.subr.mxu0 0.0
    %1120 = vmatpush1.msra.mxu0 0.0
    %1121 = vmatprep.subr.mxu0 0.0
    %1122 = vmatpush1.msra.mxu0 0.0
    %1123 = vmatprep.subr.mxu0 0.0
    %1124 = vmatpush1.msra.mxu0 0.0
    %1125 = vmatprep.subr.mxu0 0.0
    %1126 = vmatpush1.msra.mxu0 0.0
    %1127 = vmatprep.subr.mxu0 0.0
    %1128 = vmatpush1.msra.mxu0 0.0
    %1129 = vmatprep.subr.mxu0 0.0
    %1130 = vmatpush1.msra.mxu0 0.0
    %1131 = vmatprep.subr.mxu0 0.0
    %1132 = vmatpush1.msra.mxu0 0.0
    %1133 = vmatprep.subr.mxu0 0.0
    %1134 = vmatpush1.msra.mxu0 0.0
    %1135 = vmatprep.subr.mxu0 0.0
    %1136 = vmatpush1.msra.mxu0 0.0
    %1137 = vmatprep.subr.mxu0 0.0
    %1138 = vmatpush1.msra.mxu0 0.0
    %1139 = vmatprep.subr.mxu0 0.0
    %1140 = vmatpush1.msra.mxu0 0.0
    %1141 = vmatprep.subr.mxu0 0.0
    %1142 = vmatpush1.msra.mxu0 0.0
    %1143 = vmatprep.subr.mxu0 0.0
    %1144 = vmatpush1.msra.mxu0 0.0
    %1145 = vmatprep.subr.mxu0 0.0
    %1146 = vmatpush1.msra.mxu0 0.0
    %1147 = vmatprep.subr.mxu0 0.0
    %1148 = vmatpush1.msra.mxu0 0.0
    %1149 = vmatprep.subr.mxu0 0.0
    %1150 = vmatpush1.msra.mxu0 0.0
    %1151 = vmatprep.subr.mxu0 0.0
    %1152 = vmatpush1.msra.mxu0 0.0
    %1153 = vmatprep.subr.mxu0 0.0
    %1154 = vmatpush1.msra.mxu0 0.0
    %1155 = vmatprep.subr.mxu0 0.0
    %1156 = vmatpush1.msra.mxu0 0.0
    %1157 = vmatprep.subr.mxu0 0.0
    %1158 = vmatpush1.msra.mxu0 0.0
    %1159 = vmatprep.subr.mxu0 0.0
    %1160 = vmatpush1.msra.mxu0 0.0
    %1161 = vmatprep.subr.mxu0 0.0
    %1162 = vmatpush1.msra.mxu0 0.0
    %1163 = vmatprep.subr.mxu0 0.0
    %1164 = vmatpush1.msra.mxu0 0.0
    %1165 = vmatprep.subr.mxu0 0.0
    %1166 = vmatpush1.msra.mxu0 0.0
    %1167 = vmatprep.subr.mxu0 0.0
    %1168 = vmatpush1.msra.mxu0 0.0
    %1169 = vmatprep.subr.mxu0 0.0
    %1170 = vmatpush1.msra.mxu0 0.0
    %1171 = vmatprep.subr.mxu0 0.0
    %1172 = vmatpush1.msra.mxu0 0.0
    %1173 = vmatprep.subr.mxu0 0.0
    %1174 = vmatpush1.msra.mxu0 0.0
    %1175 = vmatprep.subr.mxu0 0.0
    %1176 = vmatpush1.msra.mxu0 0.0
    %1177 = vmatprep.subr.mxu0 0.0
    %1178 = vmatpush1.msra.mxu0 0.0
    %1179 = vmatprep.mubr.f32.mxu0 0.0
    %1180 = vmatmul.mubr.f32.gmra.mrb[0].mxu0 %v1113
    %v1181 = vpop.f32.mrb[0].mxu0
    %v1182 = vadd.f32 0.0, %v1181
    %v1183 = vpop.f32.mrb[0].mxu0
    %1184 = vdwg.mxu0
    %v1185 = vrcp.pop %v1182
    %v1186 = vmul.f32 %v1111, %v1185
    %v1187 = vmul.f32 %v1186, 0.992
    %v1188 = vadd.f32 %v1187, 0.001
    %v1190 = vsel %vm933, %v1188, 0
    %1192 = vmatprep.subr.mxu0 0.0
    %1193 = vmatpush1.msra.mxu0 %v928
    %1194 = vmatprep.subr.mxu0 0.0
    %1195 = vmatpush1.msra.mxu0 %v929
    %1196 = vmatprep.subr.mxu0 0.0
    %1197 = vmatpush1.msra.mxu0 0.0
    %1198 = vmatprep.subr.mxu0 0.0
    %1199 = vmatpush1.msra.mxu0 0.0
    %1200 = vmatprep.subr.mxu0 0.0
    %1201 = vmatpush1.msra.mxu0 0.0
    %1202 = vmatprep.subr.mxu0 0.0
    %1203 = vmatpush1.msra.mxu0 0.0
    %1204 = vmatprep.subr.mxu0 0.0
    %1205 = vmatpush1.msra.mxu0 0.0
    %1206 = vmatprep.subr.mxu0 0.0
    %1207 = vmatpush1.msra.mxu0 0.0
    %1208 = vmatprep.subr.mxu0 0.0
    %1209 = vmatpush1.msra.mxu0 0.0
    %1210 = vmatprep.subr.mxu0 0.0
    %1211 = vmatpush1.msra.mxu0 0.0
    %1212 = vmatprep.subr.mxu0 0.0
    %1213 = vmatpush1.msra.mxu0 0.0
    %1214 = vmatprep.subr.mxu0 0.0
    %1215 = vmatpush1.msra.mxu0 0.0
    %1216 = vmatprep.subr.mxu0 0.0
    %1217 = vmatpush1.msra.mxu0 0.0
    %1218 = vmatprep.subr.mxu0 0.0
    %1219 = vmatpush1.msra.mxu0 0.0
    %1220 = vmatprep.subr.mxu0 0.0
    %1221 = vmatpush1.msra.mxu0 0.0
    %1222 = vmatprep.subr.mxu0 0.0
    %1223 = vmatpush1.msra.mxu0 0.0
    %1224 = vmatprep.subr.mxu0 0.0
    %1225 = vmatpush1.msra.mxu0 0.0
    %1226 = vmatprep.subr.mxu0 0.0
    %1227 = vmatpush1.msra.mxu0 0.0
    %1228 = vmatprep.subr.mxu0 0.0
    %1229 = vmatpush1.msra.mxu0 0.0
    %1230 = vmatprep.subr.mxu0 0.0
    %1231 = vmatpush1.msra.mxu0 0.0
    %1232 = vmatprep.subr.mxu0 0.0
    %1233 = vmatpush1.msra.mxu0 0.0
    %1234 = vmatprep.subr.mxu0 0.0
    %1235 = vmatpush1.msra.mxu0 0.0
    %1236 = vmatprep.subr.mxu0 0.0
    %1237 = vmatpush1.msra.mxu0 0.0
    %1238 = vmatprep.subr.mxu0 0.0
    %1239 = vmatpush1.msra.mxu0 0.0
    %1240 = vmatprep.subr.mxu0 0.0
    %1241 = vmatpush1.msra.mxu0 0.0
    %1242 = vmatprep.subr.mxu0 0.0
    %1243 = vmatpush1.msra.mxu0 0.0
    %1244 = vmatprep.subr.mxu0 0.0
    %1245 = vmatpush1.msra.mxu0 0.0
    %1246 = vmatprep.subr.mxu0 0.0
    %1247 = vmatpush1.msra.mxu0 0.0
    %1248 = vmatprep.subr.mxu0 0.0
    %1249 = vmatpush1.msra.mxu0 0.0
    %1250 = vmatprep.subr.mxu0 0.0
    %1251 = vmatpush1.msra.mxu0 0.0
    %1252 = vmatprep.subr.mxu0 0.0
    %1253 = vmatpush1.msra.mxu0 0.0
    %1254 = vmatprep.subr.mxu0 0.0
    %1255 = vmatpush1.msra.mxu0 0.0
    %1256 = vmatprep.mubr.f32.mxu0 0.0
    %1257 = vmatmul.mubr.f32.gmra.mrb[0].mxu0 %v1190
    %v1258 = vpop.f32.mrb[0].mxu0
    %v1259 = vadd.f32 0.0, %v1258
    %v1260 = vpop.f32.mrb[0].mxu0
    %1261 = vdwg.mxu0
    %v1262 = vmul.f32 %v1259, 2.0
    %v1263 = vsub.f32 %v1262, 1.0
    %v1264 = vmul.f32 %v1263, %v1096
    %v1265 = vadd.f32 %v1264, %v1103
    %vm1266 = vcmp.gt.f32.partialorder %v840, 20.0
    %v1267 = vmin.f32 %v840, 20.0
    %v1268 = vmul.f32 %v1267, 1.442695
    %v1269 = vpow.pop %v1268
    %v1270 = vadd.f32 %v1269, 1.0
    %v1271 = vlog2.pop %v1270
    %v1272 = vmul.f32 %v1271, 0.6931472
    %v1273 = vmul.f32 -0.5, %v1269
    %v1274 = vadd.f32 %v1273, 1.0
    %v1275 = vmul.f32 %v1274, %v1269
    %v1276 = vand.u32 2147483647, %v1269
    %vm1277 = vcmp.lt.f32.partialorder %v1276, 0.0004427343
    %v1278 = vsel %vm1277, %v1275, %v1272
    %v1279 = vsel %vm1266, %v840, %v1278
    %v1280 = vadd.f32 %v1279, 0.001
    %vm1281 = vcmask 146432
    %v1283 = vsel %vm1281, %v1105, 0
    %vm1285 = vcmask 1041408
    %v1287 = vsel %vm1285, %v932, 0
    %1289 = vmatprep.subr.mxu0 0.0
    %1290 = vmatpush1.msra.mxu0 %v930
    %1291 = vmatprep.subr.mxu0 0.0
    %1292 = vmatpush1.msra.mxu0 %v931
    %1293 = vmatprep.subr.mxu0 0.0
    %1294 = vmatpush1.msra.mxu0 %v1287
    %1295 = vmatprep.subr.mxu0 0.0
    %1296 = vmatpush1.msra.mxu0 0.0
    %1297 = vmatprep.subr.mxu0 0.0
    %1298 = vmatpush1.msra.mxu0 0.0
    %1299 = vmatprep.subr.mxu0 0.0
    %1300 = vmatpush1.msra.mxu0 0.0
    %1301 = vmatprep.subr.mxu0 0.0
    %1302 = vmatpush1.msra.mxu0 0.0
    %1303 = vmatprep.subr.mxu0 0.0
    %1304 = vmatpush1.msra.mxu0 0.0
    %1305 = vmatprep.subr.mxu0 0.0
    %1306 = vmatpush1.msra.mxu0 0.0
    %1307 = vmatprep.subr.mxu0 0.0
    %1308 = vmatpush1.msra.mxu0 0.0
    %1309 = vmatprep.subr.mxu0 0.0
    %1310 = vmatpush1.msra.mxu0 0.0
    %1311 = vmatprep.subr.mxu0 0.0
    %1312 = vmatpush1.msra.mxu0 0.0
    %1313 = vmatprep.subr.mxu0 0.0
    %1314 = vmatpush1.msra.mxu0 0.0
    %1315 = vmatprep.subr.mxu0 0.0
    %1316 = vmatpush1.msra.mxu0 0.0
    %1317 = vmatprep.subr.mxu0 0.0
    %1318 = vmatpush1.msra.mxu0 0.0
    %1319 = vmatprep.subr.mxu0 0.0
    %1320 = vmatpush1.msra.mxu0 0.0
    %1321 = vmatprep.subr.mxu0 0.0
    %1322 = vmatpush1.msra.mxu0 0.0
    %1323 = vmatprep.subr.mxu0 0.0
    %1324 = vmatpush1.msra.mxu0 0.0
    %1325 = vmatprep.subr.mxu0 0.0
    %1326 = vmatpush1.msra.mxu0 0.0
    %1327 = vmatprep.subr.mxu0 0.0
    %1328 = vmatpush1.msra.mxu0 0.0
    %1329 = vmatprep.subr.mxu0 0.0
    %1330 = vmatpush1.msra.mxu0 0.0
    %1331 = vmatprep.subr.mxu0 0.0
    %1332 = vmatpush1.msra.mxu0 0.0
    %1333 = vmatprep.subr.mxu0 0.0
    %1334 = vmatpush1.msra.mxu0 0.0
    %1335 = vmatprep.subr.mxu0 0.0
    %1336 = vmatpush1.msra.mxu0 0.0
    %1337 = vmatprep.subr.mxu0 0.0
    %1338 = vmatpush1.msra.mxu0 0.0
    %1339 = vmatprep.subr.mxu0 0.0
    %1340 = vmatpush1.msra.mxu0 0.0
    %1341 = vmatprep.subr.mxu0 0.0
    %1342 = vmatpush1.msra.mxu0 0.0
    %1343 = vmatprep.subr.mxu0 0.0
    %1344 = vmatpush1.msra.mxu0 0.0
    %1345 = vmatprep.subr.mxu0 0.0
    %1346 = vmatpush1.msra.mxu0 0.0
    %1347 = vmatprep.subr.mxu0 0.0
    %1348 = vmatpush1.msra.mxu0 0.0
    %1349 = vmatprep.subr.mxu0 0.0
    %1350 = vmatpush1.msra.mxu0 0.0
    %1351 = vmatprep.subr.mxu0 0.0
    %1352 = vmatpush1.msra.mxu0 0.0
    %1353 = vmatprep.mubr.f32.mxu0 0.0
    %1354 = vmatmul.mubr.f32.gmra.mrb[0].mxu0 %v1283
    %v1355 = vpop.f32.mrb[0].mxu0
    %v1356 = vadd.f32 0.0, %v1355
    %v1357 = vpop.f32.mrb[0].mxu0
    %1358 = vdwg.mxu0
    %v1360 = vsel %vm1281, %v1265, 0
    %1362 = vmatprep.subr.mxu0 0.0
    %1363 = vmatpush1.msra.mxu0 %v930
    %1364 = vmatprep.subr.mxu0 0.0
    %1365 = vmatpush1.msra.mxu0 %v931
    %1366 = vmatprep.subr.mxu0 0.0
    %1367 = vmatpush1.msra.mxu0 %v1287
    %1368 = vmatprep.subr.mxu0 0.0
    %1369 = vmatpush1.msra.mxu0 0.0
    %1370 = vmatprep.subr.mxu0 0.0
    %1371 = vmatpush1.msra.mxu0 0.0
    %1372 = vmatprep.subr.mxu0 0.0
    %1373 = vmatpush1.msra.mxu0 0.0
    %1374 = vmatprep.subr.mxu0 0.0
    %1375 = vmatpush1.msra.mxu0 0.0
    %1376 = vmatprep.subr.mxu0 0.0
    %1377 = vmatpush1.msra.mxu0 0.0
    %1378 = vmatprep.subr.mxu0 0.0
    %1379 = vmatpush1.msra.mxu0 0.0
    %1380 = vmatprep.subr.mxu0 0.0
    %1381 = vmatpush1.msra.mxu0 0.0
    %1382 = vmatprep.subr.mxu0 0.0
    %1383 = vmatpush1.msra.mxu0 0.0
    %1384 = vmatprep.subr.mxu0 0.0
    %1385 = vmatpush1.msra.mxu0 0.0
    %1386 = vmatprep.subr.mxu0 0.0
    %1387 = vmatpush1.msra.mxu0 0.0
    %1388 = vmatprep.subr.mxu0 0.0
    %1389 = vmatpush1.msra.mxu0 0.0
    %1390 = vmatprep.subr.mxu0 0.0
    %1391 = vmatpush1.msra.mxu0 0.0
    %1392 = vmatprep.subr.mxu0 0.0
    %1393 = vmatpush1.msra.mxu0 0.0
    %1394 = vmatprep.subr.mxu0 0.0
    %1395 = vmatpush1.msra.mxu0 0.0
    %1396 = vmatprep.subr.mxu0 0.0
    %1397 = vmatpush1.msra.mxu0 0.0
    %1398 = vmatprep.subr.mxu0 0.0
    %1399 = vmatpush1.msra.mxu0 0.0
    %1400 = vmatprep.subr.mxu0 0.0
    %1401 = vmatpush1.msra.mxu0 0.0
    %1402 = vmatprep.subr.mxu0 0.0
    %1403 = vmatpush1.msra.mxu0 0.0
    %1404 = vmatprep.subr.mxu0 0.0
    %1405 = vmatpush1.msra.mxu0 0.0
    %1406 = vmatprep.subr.mxu0 0.0
    %1407 = vmatpush1.msra.mxu0 0.0
    %1408 = vmatprep.subr.mxu0 0.0
    %1409 = vmatpush1.msra.mxu0 0.0
    %1410 = vmatprep.subr.mxu0 0.0
    %1411 = vmatpush1.msra.mxu0 0.0
    %1412 = vmatprep.subr.mxu0 0.0
    %1413 = vmatpush1.msra.mxu0 0.0
    %1414 = vmatprep.subr.mxu0 0.0
    %1415 = vmatpush1.msra.mxu0 0.0
    %1416 = vmatprep.subr.mxu0 0.0
    %1417 = vmatpush1.msra.mxu0 0.0
    %1418 = vmatprep.subr.mxu0 0.0
    %1419 = vmatpush1.msra.mxu0 0.0
    %1420 = vmatprep.subr.mxu0 0.0
    %1421 = vmatpush1.msra.mxu0 0.0
    %1422 = vmatprep.subr.mxu0 0.0
    %1423 = vmatpush1.msra.mxu0 0.0
    %1424 = vmatprep.subr.mxu0 0.0
    %1425 = vmatpush1.msra.mxu0 0.0
    %1426 = vmatprep.mubr.f32.mxu0 0.0
    %1427 = vmatmul.mubr.f32.gmra.mrb[0].mxu0 %v1360
    %v1428 = vpop.f32.mrb[0].mxu0
    %v1429 = vadd.f32 0.0, %v1428
    %v1430 = vpop.f32.mrb[0].mxu0
    %1431 = vdwg.mxu0
    %v1433 = vsel %vm1281, %v1280, 0
    %1435 = vmatprep.subr.mxu0 0.0
    %1436 = vmatpush1.msra.mxu0 %v930
    %1437 = vmatprep.subr.mxu0 0.0
    %1438 = vmatpush1.msra.mxu0 %v931
    %1439 = vmatprep.subr.mxu0 0.0
    %1440 = vmatpush1.msra.mxu0 %v1287
    %1441 = vmatprep.subr.mxu0 0.0
    %1442 = vmatpush1.msra.mxu0 0.0
    %1443 = vmatprep.subr.mxu0 0.0
    %1444 = vmatpush1.msra.mxu0 0.0
    %1445 = vmatprep.subr.mxu0 0.0
    %1446 = vmatpush1.msra.mxu0 0.0
    %1447 = vmatprep.subr.mxu0 0.0
    %1448 = vmatpush1.msra.mxu0 0.0
    %1449 = vmatprep.subr.mxu0 0.0
    %1450 = vmatpush1.msra.mxu0 0.0
    %1451 = vmatprep.subr.mxu0 0.0
    %1452 = vmatpush1.msra.mxu0 0.0
    %1453 = vmatprep.subr.mxu0 0.0
    %1454 = vmatpush1.msra.mxu0 0.0
    %1455 = vmatprep.subr.mxu0 0.0
    %1456 = vmatpush1.msra.mxu0 0.0
    %1457 = vmatprep.subr.mxu0 0.0
    %1458 = vmatpush1.msra.mxu0 0.0
    %1459 = vmatprep.subr.mxu0 0.0
    %1460 = vmatpush1.msra.mxu0 0.0
    %1461 = vmatprep.subr.mxu0 0.0
    %1462 = vmatpush1.msra.mxu0 0.0
    %1463 = vmatprep.subr.mxu0 0.0
    %1464 = vmatpush1.msra.mxu0 0.0
    %1465 = vmatprep.subr.mxu0 0.0
    %1466 = vmatpush1.msra.mxu0 0.0
    %1467 = vmatprep.subr.mxu0 0.0
    %1468 = vmatpush1.msra.mxu0 0.0
    %1469 = vmatprep.subr.mxu0 0.0
    %1470 = vmatpush1.msra.mxu0 0.0
    %1471 = vmatprep.subr.mxu0 0.0
    %1472 = vmatpush1.msra.mxu0 0.0
    %1473 = vmatprep.subr.mxu0 0.0
    %1474 = vmatpush1.msra.mxu0 0.0
    %1475 = vmatprep.subr.mxu0 0.0
    %1476 = vmatpush1.msra.mxu0 0.0
    %1477 = vmatprep.subr.mxu0 0.0
    %1478 = vmatpush1.msra.mxu0 0.0
    %1479 = vmatprep.subr.mxu0 0.0
    %1480 = vmatpush1.msra.mxu0 0.0
    %1481 = vmatprep.subr.mxu0 0.0
    %1482 = vmatpush1.msra.mxu0 0.0
    %1483 = vmatprep.subr.mxu0 0.0
    %1484 = vmatpush1.msra.mxu0 0.0
    %1485 = vmatprep.subr.mxu0 0.0
    %1486 = vmatpush1.msra.mxu0 0.0
    %1487 = vmatprep.subr.mxu0 0.0
    %1488 = vmatpush1.msra.mxu0 0.0
    %1489 = vmatprep.subr.mxu0 0.0
    %1490 = vmatpush1.msra.mxu0 0.0
    %1491 = vmatprep.subr.mxu0 0.0
    %1492 = vmatpush1.msra.mxu0 0.0
    %1493 = vmatprep.subr.mxu0 0.0
    %1494 = vmatpush1.msra.mxu0 0.0
    %1495 = vmatprep.subr.mxu0 0.0
    %1496 = vmatpush1.msra.mxu0 0.0
    %1497 = vmatprep.subr.mxu0 0.0
    %1498 = vmatpush1.msra.mxu0 0.0
    %1499 = vmatprep.mubr.f32.mxu0 0.0
    %1500 = vmatmul.mubr.f32.gmra.mrb[0].mxu0 %v1433
    %v1501 = vpop.f32.mrb[0].mxu0
    %v1502 = vadd.f32 0.0, %v1501
    %v1503 = vpop.f32.mrb[0].mxu0
    %1504 = vdwg.mxu0
    %v1505 = vld [vmem:[%s17] sm:$0x3]
    %vm1506 = vcmask 15360
    %v1508 = vsel %vm1506, %v923, 0
    %v1511 = vsel %vm1285, %v1505, 0
    %1513 = vmatprep.subr.mxu0 0.0
    %1514 = vmatpush1.msra.mxu0 %v1511
    %1515 = vmatprep.subr.mxu0 0.0
    %1516 = vmatpush1.msra.mxu0 0.0
    %1517 = vmatprep.subr.mxu0 0.0
    %1518 = vmatpush1.msra.mxu0 0.0
    %1519 = vmatprep.subr.mxu0 0.0
    %1520 = vmatpush1.msra.mxu0 0.0
    %1521 = vmatprep.subr.mxu0 0.0
    %1522 = vmatpush1.msra.mxu0 0.0
    %1523 = vmatprep.subr.mxu0 0.0
    %1524 = vmatpush1.msra.mxu0 0.0
    %1525 = vmatprep.subr.mxu0 0.0
    %1526 = vmatpush1.msra.mxu0 0.0
    %1527 = vmatprep.subr.mxu0 0.0
    %1528 = vmatpush1.msra.mxu0 0.0
    %1529 = vmatprep.subr.mxu0 0.0
    %1530 = vmatpush1.msra.mxu0 0.0
    %1531 = vmatprep.subr.mxu0 0.0
    %1532 = vmatpush1.msra.mxu0 0.0
    %1533 = vmatprep.subr.mxu0 0.0
    %1534 = vmatpush1.msra.mxu0 0.0
    %1535 = vmatprep.subr.mxu0 0.0
    %1536 = vmatpush1.msra.mxu0 0.0
    %1537 = vmatprep.subr.mxu0 0.0
    %1538 = vmatpush1.msra.mxu0 0.0
    %1539 = vmatprep.subr.mxu0 0.0
    %1540 = vmatpush1.msra.mxu0 0.0
    %1541 = vmatprep.subr.mxu0 0.0
    %1542 = vmatpush1.msra.mxu0 0.0
    %1543 = vmatprep.subr.mxu0 0.0
    %1544 = vmatpush1.msra.mxu0 0.0
    %1545 = vmatprep.subr.mxu0 0.0
    %1546 = vmatpush1.msra.mxu0 0.0
    %1547 = vmatprep.subr.mxu0 0.0
    %1548 = vmatpush1.msra.mxu0 0.0
    %1549 = vmatprep.subr.mxu0 0.0
    %1550 = vmatpush1.msra.mxu0 0.0
    %1551 = vmatprep.subr.mxu0 0.0
    %1552 = vmatpush1.msra.mxu0 0.0
    %1553 = vmatprep.subr.mxu0 0.0
    %1554 = vmatpush1.msra.mxu0 0.0
    %1555 = vmatprep.subr.mxu0 0.0
    %1556 = vmatpush1.msra.mxu0 0.0
    %1557 = vmatprep.subr.mxu0 0.0
    %1558 = vmatpush1.msra.mxu0 0.0
    %1559 = vmatprep.subr.mxu0 0.0
    %1560 = vmatpush1.msra.mxu0 0.0
    %1561 = vmatprep.subr.mxu0 0.0
    %1562 = vmatpush1.msra.mxu0 0.0
    %1563 = vmatprep.subr.mxu0 0.0
    %1564 = vmatpush1.msra.mxu0 0.0
    %1565 = vmatprep.subr.mxu0 0.0
    %1566 = vmatpush1.msra.mxu0 0.0
    %1567 = vmatprep.subr.mxu0 0.0
    %1568 = vmatpush1.msra.mxu0 0.0
    %1569 = vmatprep.subr.mxu0 0.0
    %1570 = vmatpush1.msra.mxu0 0.0
    %1571 = vmatprep.subr.mxu0 0.0
    %1572 = vmatpush1.msra.mxu0 0.0
    %1573 = vmatprep.subr.mxu0 0.0
    %1574 = vmatpush1.msra.mxu0 0.0
    %1575 = vmatprep.subr.mxu0 0.0
    %1576 = vmatpush1.msra.mxu0 0.0
    %1577 = vmatprep.mubr.f32.mxu0 0.0
    %1578 = vmatmul.mubr.f32.gmra.mrb[0].mxu0 %v1508
    %v1579 = vpop.f32.mrb[0].mxu0
    %v1580 = vadd.f32 0.0, %v1579
    %v1581 = vpop.f32.mrb[0].mxu0
    %1582 = vdwg.mxu0
    %v1583 = vmul.f32 %v924, 1e-06
    %v1585 = vlaneseq
    %v1586 = vshrl.u32 %v1585, 7
    %v1587 = vsub.s32 0, %v1586
    %v1588 = vrot.slane %v1583, %v1587
    %v1590 = vadd.f32 %v1265, %v1588
    %vm1591 = vcmp.ge.f32.partialorder %v1580, %v1590
    %v1592 = vsel %vm1591, 1, 0
    %v1593 = vcvt.s32.f32 %v1592
    %v1595 = vsel %vm1281, %v1593, 0
    %1597 = vmatprep.subr.mxu0 0.0
    %1598 = vmatpush1.msra.mxu0 %v930
    %1599 = vmatprep.subr.mxu0 0.0
    %1600 = vmatpush1.msra.mxu0 %v931
    %1601 = vmatprep.subr.mxu0 0.0
    %1602 = vmatpush1.msra.mxu0 %v1287
    %1603 = vmatprep.subr.mxu0 0.0
    %1604 = vmatpush1.msra.mxu0 0.0
    %1605 = vmatprep.subr.mxu0 0.0
    %1606 = vmatpush1.msra.mxu0 0.0
    %1607 = vmatprep.subr.mxu0 0.0
    %1608 = vmatpush1.msra.mxu0 0.0
    %1609 = vmatprep.subr.mxu0 0.0
    %1610 = vmatpush1.msra.mxu0 0.0
    %1611 = vmatprep.subr.mxu0 0.0
    %1612 = vmatpush1.msra.mxu0 0.0
    %1613 = vmatprep.subr.mxu0 0.0
    %1614 = vmatpush1.msra.mxu0 0.0
    %1615 = vmatprep.subr.mxu0 0.0
    %1616 = vmatpush1.msra.mxu0 0.0
    %1617 = vmatprep.subr.mxu0 0.0
    %1618 = vmatpush1.msra.mxu0 0.0
    %1619 = vmatprep.subr.mxu0 0.0
    %1620 = vmatpush1.msra.mxu0 0.0
    %1621 = vmatprep.subr.mxu0 0.0
    %1622 = vmatpush1.msra.mxu0 0.0
    %1623 = vmatprep.subr.mxu0 0.0
    %1624 = vmatpush1.msra.mxu0 0.0
    %1625 = vmatprep.subr.mxu0 0.0
    %1626 = vmatpush1.msra.mxu0 0.0
    %1627 = vmatprep.subr.mxu0 0.0
    %1628 = vmatpush1.msra.mxu0 0.0
    %1629 = vmatprep.subr.mxu0 0.0
    %1630 = vmatpush1.msra.mxu0 0.0
    %1631 = vmatprep.subr.mxu0 0.0
    %1632 = vmatpush1.msra.mxu0 0.0
    %1633 = vmatprep.subr.mxu0 0.0
    %1634 = vmatpush1.msra.mxu0 0.0
    %1635 = vmatprep.subr.mxu0 0.0
    %1636 = vmatpush1.msra.mxu0 0.0
    %1637 = vmatprep.subr.mxu0 0.0
    %1638 = vmatpush1.msra.mxu0 0.0
    %1639 = vmatprep.subr.mxu0 0.0
    %1640 = vmatpush1.msra.mxu0 0.0
    %1641 = vmatprep.subr.mxu0 0.0
    %1642 = vmatpush1.msra.mxu0 0.0
    %1643 = vmatprep.subr.mxu0 0.0
    %1644 = vmatpush1.msra.mxu0 0.0
    %1645 = vmatprep.subr.mxu0 0.0
    %1646 = vmatpush1.msra.mxu0 0.0
    %1647 = vmatprep.subr.mxu0 0.0
    %1648 = vmatpush1.msra.mxu0 0.0
    %1649 = vmatprep.subr.mxu0 0.0
    %1650 = vmatpush1.msra.mxu0 0.0
    %1651 = vmatprep.subr.mxu0 0.0
    %1652 = vmatpush1.msra.mxu0 0.0
    %1653 = vmatprep.subr.mxu0 0.0
    %1654 = vmatpush1.msra.mxu0 0.0
    %1655 = vmatprep.subr.mxu0 0.0
    %1656 = vmatpush1.msra.mxu0 0.0
    %1657 = vmatprep.subr.mxu0 0.0
    %1658 = vmatpush1.msra.mxu0 0.0
    %1659 = vmatprep.subr.mxu0 0.0
    %1660 = vmatpush1.msra.mxu0 0.0
    %1661 = vmatprep.mubr.f32.mxu0 0.0
    %1662 = vmatmul.mubr.f32.gmra.mrb[0].mxu0 %v1595
    %v1663 = vpop.f32.mrb[0].mxu0
    %v1664 = vadd.f32 0.0, %v1663
    %v1665 = vpop.f32.mrb[0].mxu0
    %1666 = vdwg.mxu0
    %v1667 = vsub.f32 1.0, %v1664
    %v1668 = vmul.f32 %v1593, %v1667
    %vm1669 = vcmp.gt.f32.partialorder %v1668, 0.5
    %v1670 = vsub.f32 %v1356, %v1105
    %v1671 = vsub.f32 %v1429, %v1265
    %v1672 = vrcp.pop %v1670
    %v1673 = vmul.f32 %v1671, %v1672
    %v1674 = vsub.f32 %v1580, %v1265
    %v1675 = vadd.f32 %v1280, %v1502
    %v1676 = vmul.f32 %v1673, 2.0
    %v1677 = vsub.f32 %v1675, %v1676
    %v1678 = vmul.f32 %v1674, %v1677
    %v1679 = vsub.f32 %v1673, %v1280
    %v1680 = vmul.f32 %v1671, %v1679
    %v1681 = vadd.f32 %v1678, %v1680
    %v1682 = vmul.f32 %v1671, %v1280
    %v1683 = vsub.f32 %v1682, %v1678
    %v1684 = vsub.f32 0.0, %v1673
    %v1685 = vmul.f32 %v1684, %v1674
    %v1686 = vmul.f32 %v1683, %v1683
    %v1687 = vmul.f32 %v1681, 4.0
    %v1688 = vmul.f32 %v1687, %v1685
    %v1689 = vsub.f32 %v1686, %v1688
    %v1690 = vmax.f32 %v1689, 0.0
    %v1691 = vmul.f32 %v1685, 2.0
    %v1692 = vsub.f32 0.0, %v1683
    %v1693 = vrsqrt.pop %v1690
    %v1694 = vmul.f32 %v1690, %v1693
    %vm1695 = vcmp.eq.f32.partialorder %v1690, inf
    %v1696 = vsel %vm1695, %v1690, %v1694
    %vm1697 = vcmp.eq.f32.partialorder %v1690, 0.0
    %v1698 = vand.u32 %v1690, 2147483648
    %v1699 = vsel %vm1697, %v1698, %v1696
    %v1700 = vsub.f32 %v1692, %v1699
    %v1701 = vrcp.pop %v1700
    %v1702 = vmul.f32 %v1691, %v1701
    %v1703 = vmul.f32 %v1702, %v1670
    %v1704 = vadd.f32 %v1703, %v1105
    %v1705 = vsub.f32 1.0, %v1702
    %v1706 = vmul.f32 %v1702, %v1705
    %v1707 = vmul.f32 %v1677, %v1706
    %v1708 = vadd.f32 %v1673, %v1707
    %v1709 = vmul.f32 %v1673, %v1673
    %v1710 = vmul.f32 %v1502, %v1702
    %v1711 = vmul.f32 %v1710, %v1702
    %v1712 = vmul.f32 %v1676, %v1706
    %v1713 = vadd.f32 %v1711, %v1712
    %v1714 = vmul.f32 %v1280, %v1705
    %v1715 = vmul.f32 %v1714, %v1705
    %v1716 = vadd.f32 %v1713, %v1715
    %v1717 = vmul.f32 %v1709, %v1716
    %v1718 = vmul.f32 %v1708, %v1708
    %v1719 = vrcp.pop %v1717
    %v1720 = vmul.f32 %v1718, %v1719
    %v1721 = vlog2.pop %v1720
    %v1722 = vmul.f32 %v1721, 0.6931472
    %v1723 = vld [vmem:[%s18] sm:$0xff]
    %v1724 = vld [vmem:[%s18 + $0x8] sm:$0xff]
    %v1725 = vld [vmem:[%s18 + $0x10] sm:$0x3]
    %v1726 = vsel %vm1669, %v1704, 0.0
    %v1728 = vsel %vm1281, %v1726, 0
    %v1731 = vsel %vm1285, %v1725, 0
    %1733 = vmatprep.subr.mxu0 0.0
    %1734 = vmatpush1.msra.mxu0 %v1723
    %1735 = vmatprep.subr.mxu0 0.0
    %1736 = vmatpush1.msra.mxu0 %v1724
    %1737 = vmatprep.subr.mxu0 0.0
    %1738 = vmatpush1.msra.mxu0 %v1731
    %1739 = vmatprep.subr.mxu0 0.0
    %1740 = vmatpush1.msra.mxu0 0.0
    %1741 = vmatprep.subr.mxu0 0.0
    %1742 = vmatpush1.msra.mxu0 0.0
    %1743 = vmatprep.subr.mxu0 0.0
    %1744 = vmatpush1.msra.mxu0 0.0
    %1745 = vmatprep.subr.mxu0 0.0
    %1746 = vmatpush1.msra.mxu0 0.0
    %1747 = vmatprep.subr.mxu0 0.0
    %1748 = vmatpush1.msra.mxu0 0.0
    %1749 = vmatprep.subr.mxu0 0.0
    %1750 = vmatpush1.msra.mxu0 0.0
    %1751 = vmatprep.subr.mxu0 0.0
    %1752 = vmatpush1.msra.mxu0 0.0
    %1753 = vmatprep.subr.mxu0 0.0
    %1754 = vmatpush1.msra.mxu0 0.0
    %1755 = vmatprep.subr.mxu0 0.0
    %1756 = vmatpush1.msra.mxu0 0.0
    %1757 = vmatprep.subr.mxu0 0.0
    %1758 = vmatpush1.msra.mxu0 0.0
    %1759 = vmatprep.subr.mxu0 0.0
    %1760 = vmatpush1.msra.mxu0 0.0
    %1761 = vmatprep.subr.mxu0 0.0
    %1762 = vmatpush1.msra.mxu0 0.0
    %1763 = vmatprep.subr.mxu0 0.0
    %1764 = vmatpush1.msra.mxu0 0.0
    %1765 = vmatprep.subr.mxu0 0.0
    %1766 = vmatpush1.msra.mxu0 0.0
    %1767 = vmatprep.subr.mxu0 0.0
    %1768 = vmatpush1.msra.mxu0 0.0
    %1769 = vmatprep.subr.mxu0 0.0
    %1770 = vmatpush1.msra.mxu0 0.0
    %1771 = vmatprep.subr.mxu0 0.0
    %1772 = vmatpush1.msra.mxu0 0.0
    %1773 = vmatprep.subr.mxu0 0.0
    %1774 = vmatpush1.msra.mxu0 0.0
    %1775 = vmatprep.subr.mxu0 0.0
    %1776 = vmatpush1.msra.mxu0 0.0
    %1777 = vmatprep.subr.mxu0 0.0
    %1778 = vmatpush1.msra.mxu0 0.0
    %1779 = vmatprep.subr.mxu0 0.0
    %1780 = vmatpush1.msra.mxu0 0.0
    %1781 = vmatprep.subr.mxu0 0.0
    %1782 = vmatpush1.msra.mxu0 0.0
    %1783 = vmatprep.subr.mxu0 0.0
    %1784 = vmatpush1.msra.mxu0 0.0
    %1785 = vmatprep.subr.mxu0 0.0
    %1786 = vmatpush1.msra.mxu0 0.0
    %1787 = vmatprep.subr.mxu0 0.0
    %1788 = vmatpush1.msra.mxu0 0.0
    %1789 = vmatprep.subr.mxu0 0.0
    %1790 = vmatpush1.msra.mxu0 0.0
    %1791 = vmatprep.subr.mxu0 0.0
    %1792 = vmatpush1.msra.mxu0 0.0
    %1793 = vmatprep.subr.mxu0 0.0
    %1794 = vmatpush1.msra.mxu0 0.0
    %1795 = vmatprep.subr.mxu0 0.0
    %1796 = vmatpush1.msra.mxu0 0.0
    %1797 = vmatprep.mubr.f32.mxu0 0.0
    %1798 = vmatmul.mubr.f32.gmra.mrb[0].mxu0 %v1728
    %v1799 = vpop.f32.mrb[0].mxu0
    %v1800 = vadd.f32 0.0, %v1799
    %v1801 = vpop.f32.mrb[0].mxu0
    %1802 = vdwg.mxu0
    %v1803 = vsel %vm1669, %v1722, 0.0
    %v1805 = vsel %vm1281, %v1803, 0
    %1807 = vmatprep.subr.mxu0 0.0
    %1808 = vmatpush1.msra.mxu0 %v1723
    %1809 = vmatprep.subr.mxu0 0.0
    %1810 = vmatpush1.msra.mxu0 %v1724
    %1811 = vmatprep.subr.mxu0 0.0
    %1812 = vmatpush1.msra.mxu0 %v1731
    %1813 = vmatprep.subr.mxu0 0.0
    %1814 = vmatpush1.msra.mxu0 0.0
    %1815 = vmatprep.subr.mxu0 0.0
    %1816 = vmatpush1.msra.mxu0 0.0
    %1817 = vmatprep.subr.mxu0 0.0
    %1818 = vmatpush1.msra.mxu0 0.0
    %1819 = vmatprep.subr.mxu0 0.0
    %1820 = vmatpush1.msra.mxu0 0.0
    %1821 = vmatprep.subr.mxu0 0.0
    %1822 = vmatpush1.msra.mxu0 0.0
    %1823 = vmatprep.subr.mxu0 0.0
    %1824 = vmatpush1.msra.mxu0 0.0
    %1825 = vmatprep.subr.mxu0 0.0
    %1826 = vmatpush1.msra.mxu0 0.0
    %1827 = vmatprep.subr.mxu0 0.0
    %1828 = vmatpush1.msra.mxu0 0.0
    %1829 = vmatprep.subr.mxu0 0.0
    %1830 = vmatpush1.msra.mxu0 0.0
    %1831 = vmatprep.subr.mxu0 0.0
    %1832 = vmatpush1.msra.mxu0 0.0
    %1833 = vmatprep.subr.mxu0 0.0
    %1834 = vmatpush1.msra.mxu0 0.0
    %1835 = vmatprep.subr.mxu0 0.0
    %1836 = vmatpush1.msra.mxu0 0.0
    %1837 = vmatprep.subr.mxu0 0.0
    %1838 = vmatpush1.msra.mxu0 0.0
    %1839 = vmatprep.subr.mxu0 0.0
    %1840 = vmatpush1.msra.mxu0 0.0
    %1841 = vmatprep.subr.mxu0 0.0
    %1842 = vmatpush1.msra.mxu0 0.0
    %1843 = vmatprep.subr.mxu0 0.0
    %1844 = vmatpush1.msra.mxu0 0.0
    %1845 = vmatprep.subr.mxu0 0.0
    %1846 = vmatpush1.msra.mxu0 0.0
    %1847 = vmatprep.subr.mxu0 0.0
    %1848 = vmatpush1.msra.mxu0 0.0
    %1849 = vmatprep.subr.mxu0 0.0
    %1850 = vmatpush1.msra.mxu0 0.0
    %1851 = vmatprep.subr.mxu0 0.0
    %1852 = vmatpush1.msra.mxu0 0.0
    %1853 = vmatprep.subr.mxu0 0.0
    %1854 = vmatpush1.msra.mxu0 0.0
    %1855 = vmatprep.subr.mxu0 0.0
    %1856 = vmatpush1.msra.mxu0 0.0
    %1857 = vmatprep.subr.mxu0 0.0
    %1858 = vmatpush1.msra.mxu0 0.0
    %1859 = vmatprep.subr.mxu0 0.0
    %1860 = vmatpush1.msra.mxu0 0.0
    %1861 = vmatprep.subr.mxu0 0.0
    %1862 = vmatpush1.msra.mxu0 0.0
    %1863 = vmatprep.subr.mxu0 0.0
    %1864 = vmatpush1.msra.mxu0 0.0
    %1865 = vmatprep.subr.mxu0 0.0
    %1866 = vmatpush1.msra.mxu0 0.0
    %1867 = vmatprep.subr.mxu0 0.0
    %1868 = vmatpush1.msra.mxu0 0.0
    %1869 = vmatprep.subr.mxu0 0.0
    %1870 = vmatpush1.msra.mxu0 0.0
    %1871 = vmatprep.mubr.f32.mxu0 0.0
    %1872 = vmatmul.mubr.f32.gmra.mrb[0].mxu0 %v1805
    %v1873 = vpop.f32.mrb[0].mxu0
    %v1874 = vadd.f32 0.0, %v1873
    %v1875 = vpop.f32.mrb[0].mxu0
    %1876 = vdwg.mxu0
    %v1877 = vmul.f32 %v921, %v1800
    %v1878 = vsub.f32 1.0, %v921
    %v1879 = vmul.f32 %v1878, %v914
    %v1880 = vadd.f32 %v1877, %v1879
    %v1881 = vmul.f32 %v921, %v1874
    %v1882 = vld [vmem:[%s20] sm:$0xf]
    %v1883 = vld [vmem:[%s21] sm:$0x3]
    %v1885 = vsel %vm1506, %v1880, 0
    %v1888 = vsel %vm1285, %v1883, 0
    %1890 = vmatprep.subr.mxu0 0.0
    %1891 = vmatpush1.msra.mxu0 %v1888
    %1892 = vmatprep.subr.mxu0 0.0
    %1893 = vmatpush1.msra.mxu0 0.0
    %1894 = vmatprep.subr.mxu0 0.0
    %1895 = vmatpush1.msra.mxu0 0.0
    %1896 = vmatprep.subr.mxu0 0.0
    %1897 = vmatpush1.msra.mxu0 0.0
    %1898 = vmatprep.subr.mxu0 0.0
    %1899 = vmatpush1.msra.mxu0 0.0
    %1900 = vmatprep.subr.mxu0 0.0
    %1901 = vmatpush1.msra.mxu0 0.0
    %1902 = vmatprep.subr.mxu0 0.0
    %1903 = vmatpush1.msra.mxu0 0.0
    %1904 = vmatprep.subr.mxu0 0.0
    %1905 = vmatpush1.msra.mxu0 0.0
    %1906 = vmatprep.subr.mxu0 0.0
    %1907 = vmatpush1.msra.mxu0 0.0
    %1908 = vmatprep.subr.mxu0 0.0
    %1909 = vmatpush1.msra.mxu0 0.0
    %1910 = vmatprep.subr.mxu0 0.0
    %1911 = vmatpush1.msra.mxu0 0.0
    %1912 = vmatprep.subr.mxu0 0.0
    %1913 = vmatpush1.msra.mxu0 0.0
    %1914 = vmatprep.subr.mxu0 0.0
    %1915 = vmatpush1.msra.mxu0 0.0
    %1916 = vmatprep.subr.mxu0 0.0
    %1917 = vmatpush1.msra.mxu0 0.0
    %1918 = vmatprep.subr.mxu0 0.0
    %1919 = vmatpush1.msra.mxu0 0.0
    %1920 = vmatprep.subr.mxu0 0.0
    %1921 = vmatpush1.msra.mxu0 0.0
    %1922 = vmatprep.subr.mxu0 0.0
    %1923 = vmatpush1.msra.mxu0 0.0
    %1924 = vmatprep.subr.mxu0 0.0
    %1925 = vmatpush1.msra.mxu0 0.0
    %1926 = vmatprep.subr.mxu0 0.0
    %1927 = vmatpush1.msra.mxu0 0.0
    %1928 = vmatprep.subr.mxu0 0.0
    %1929 = vmatpush1.msra.mxu0 0.0
    %1930 = vmatprep.subr.mxu0 0.0
    %1931 = vmatpush1.msra.mxu0 0.0
    %1932 = vmatprep.subr.mxu0 0.0
    %1933 = vmatpush1.msra.mxu0 0.0
    %1934 = vmatprep.subr.mxu0 0.0
    %1935 = vmatpush1.msra.mxu0 0.0
    %1936 = vmatprep.subr.mxu0 0.0
    %1937 = vmatpush1.msra.mxu0 0.0
    %1938 = vmatprep.subr.mxu0 0.0
    %1939 = vmatpush1.msra.mxu0 0.0
    %1940 = vmatprep.subr.mxu0 0.0
    %1941 = vmatpush1.msra.mxu0 0.0
    %1942 = vmatprep.subr.mxu0 0.0
    %1943 = vmatpush1.msra.mxu0 0.0
    %1944 = vmatprep.subr.mxu0 0.0
    %1945 = vmatpush1.msra.mxu0 0.0
    %1946 = vmatprep.subr.mxu0 0.0
    %1947 = vmatpush1.msra.mxu0 0.0
    %1948 = vmatprep.subr.mxu0 0.0
    %1949 = vmatpush1.msra.mxu0 0.0
    %1950 = vmatprep.subr.mxu0 0.0
    %1951 = vmatpush1.msra.mxu0 0.0
    %1952 = vmatprep.subr.mxu0 0.0
    %1953 = vmatpush1.msra.mxu0 0.0
    %1954 = vmatprep.mubr.f32.mxu0 0.0
    %1955 = vmatmul.mubr.f32.gmra.mrb[0].mxu0 %v1885
    %v1956 = vpop.f32.mrb[0].mxu0
    %v1957 = vadd.f32 0.0, %v1956
    %v1958 = vpop.f32.mrb[0].mxu0
    %1959 = vdwg.mxu0
    %v1961 = vsel %vm82, %v1882, 0
    %1963 = vmatprep.subr.mxu0 0.0
    %1964 = vmatpush1.msra.mxu0 %v1961
    %1965 = vmatprep.subr.mxu0 0.0
    %1966 = vmatpush1.msra.mxu0 0.0
    %1967 = vmatprep.subr.mxu0 0.0
    %1968 = vmatpush1.msra.mxu0 0.0
    %1969 = vmatprep.subr.mxu0 0.0
    %1970 = vmatpush1.msra.mxu0 0.0
    %1971 = vmatprep.subr.mxu0 0.0
    %1972 = vmatpush1.msra.mxu0 0.0
    %1973 = vmatprep.subr.mxu0 0.0
    %1974 = vmatpush1.msra.mxu0 0.0
    %1975 = vmatprep.subr.mxu0 0.0
    %1976 = vmatpush1.msra.mxu0 0.0
    %1977 = vmatprep.subr.mxu0 0.0
    %1978 = vmatpush1.msra.mxu0 0.0
    %1979 = vmatprep.subr.mxu0 0.0
    %1980 = vmatpush1.msra.mxu0 0.0
    %1981 = vmatprep.subr.mxu0 0.0
    %1982 = vmatpush1.msra.mxu0 0.0
    %1983 = vmatprep.subr.mxu0 0.0
    %1984 = vmatpush1.msra.mxu0 0.0
    %1985 = vmatprep.subr.mxu0 0.0
    %1986 = vmatpush1.msra.mxu0 0.0
    %1987 = vmatprep.subr.mxu0 0.0
    %1988 = vmatpush1.msra.mxu0 0.0
    %1989 = vmatprep.subr.mxu0 0.0
    %1990 = vmatpush1.msra.mxu0 0.0
    %1991 = vmatprep.subr.mxu0 0.0
    %1992 = vmatpush1.msra.mxu0 0.0
    %1993 = vmatprep.subr.mxu0 0.0
    %1994 = vmatpush1.msra.mxu0 0.0
    %1995 = vmatprep.subr.mxu0 0.0
    %1996 = vmatpush1.msra.mxu0 0.0
    %1997 = vmatprep.subr.mxu0 0.0
    %1998 = vmatpush1.msra.mxu0 0.0
    %1999 = vmatprep.subr.mxu0 0.0
    %2000 = vmatpush1.msra.mxu0 0.0
    %2001 = vmatprep.subr.mxu0 0.0
    %2002 = vmatpush1.msra.mxu0 0.0
    %2003 = vmatprep.subr.mxu0 0.0
    %2004 = vmatpush1.msra.mxu0 0.0
    %2005 = vmatprep.subr.mxu0 0.0
    %2006 = vmatpush1.msra.mxu0 0.0
    %2007 = vmatprep.subr.mxu0 0.0
    %2008 = vmatpush1.msra.mxu0 0.0
    %2009 = vmatprep.subr.mxu0 0.0
    %2010 = vmatpush1.msra.mxu0 0.0
    %2011 = vmatprep.subr.mxu0 0.0
    %2012 = vmatpush1.msra.mxu0 0.0
    %2013 = vmatprep.subr.mxu0 0.0
    %2014 = vmatpush1.msra.mxu0 0.0
    %2015 = vmatprep.subr.mxu0 0.0
    %2016 = vmatpush1.msra.mxu0 0.0
    %2017 = vmatprep.subr.mxu0 0.0
    %2018 = vmatpush1.msra.mxu0 0.0
    %2019 = vmatprep.subr.mxu0 0.0
    %2020 = vmatpush1.msra.mxu0 0.0
    %2021 = vmatprep.subr.mxu0 0.0
    %2022 = vmatpush1.msra.mxu0 0.0
    %2023 = vmatprep.subr.mxu0 0.0
    %2024 = vmatpush1.msra.mxu0 0.0
    %2025 = vmatprep.subr.mxu0 0.0
    %2026 = vmatpush1.msra.mxu0 0.0
    %2027 = vmatprep.mubr.f32.mxu0 0.0
    %2028 = vmatmul.mubr.f32.gmra.mrb[0].mxu0 %v80
    %v2029 = vpop.f32.mrb[0].mxu0
    %v2030 = vadd.f32 %v1957, %v2029
    %v2031 = vpop.f32.mrb[0].mxu0
    %2032 = vdwg.mxu0
    %v2033 = vld [vmem:[%s22] sm:$0x3]
    %v2035 = vsel %vm1506, %v1881, 0
    %v2038 = vsel %vm1285, %v2033, 0
    %2040 = vmatprep.subr.mxu0 0.0
    %2041 = vmatpush1.msra.mxu0 %v2038
    %2042 = vmatprep.subr.mxu0 0.0
    %2043 = vmatpush1.msra.mxu0 0.0
    %2044 = vmatprep.subr.mxu0 0.0
    %2045 = vmatpush1.msra.mxu0 0.0
    %2046 = vmatprep.subr.mxu0 0.0
    %2047 = vmatpush1.msra.mxu0 0.0
    %2048 = vmatprep.subr.mxu0 0.0
    %2049 = vmatpush1.msra.mxu0 0.0
    %2050 = vmatprep.subr.mxu0 0.0
    %2051 = vmatpush1.msra.mxu0 0.0
    %2052 = vmatprep.subr.mxu0 0.0
    %2053 = vmatpush1.msra.mxu0 0.0
    %2054 = vmatprep.subr.mxu0 0.0
    %2055 = vmatpush1.msra.mxu0 0.0
    %2056 = vmatprep.subr.mxu0 0.0
    %2057 = vmatpush1.msra.mxu0 0.0
    %2058 = vmatprep.subr.mxu0 0.0
    %2059 = vmatpush1.msra.mxu0 0.0
    %2060 = vmatprep.subr.mxu0 0.0
    %2061 = vmatpush1.msra.mxu0 0.0
    %2062 = vmatprep.subr.mxu0 0.0
    %2063 = vmatpush1.msra.mxu0 0.0
    %2064 = vmatprep.subr.mxu0 0.0
    %2065 = vmatpush1.msra.mxu0 0.0
    %2066 = vmatprep.subr.mxu0 0.0
    %2067 = vmatpush1.msra.mxu0 0.0
    %2068 = vmatprep.subr.mxu0 0.0
    %2069 = vmatpush1.msra.mxu0 0.0
    %2070 = vmatprep.subr.mxu0 0.0
    %2071 = vmatpush1.msra.mxu0 0.0
    %2072 = vmatprep.subr.mxu0 0.0
    %2073 = vmatpush1.msra.mxu0 0.0
    %2074 = vmatprep.subr.mxu0 0.0
    %2075 = vmatpush1.msra.mxu0 0.0
    %2076 = vmatprep.subr.mxu0 0.0
    %2077 = vmatpush1.msra.mxu0 0.0
    %2078 = vmatprep.subr.mxu0 0.0
    %2079 = vmatpush1.msra.mxu0 0.0
    %2080 = vmatprep.subr.mxu0 0.0
    %2081 = vmatpush1.msra.mxu0 0.0
    %2082 = vmatprep.subr.mxu0 0.0
    %2083 = vmatpush1.msra.mxu0 0.0
    %2084 = vmatprep.subr.mxu0 0.0
    %2085 = vmatpush1.msra.mxu0 0.0
    %2086 = vmatprep.subr.mxu0 0.0
    %2087 = vmatpush1.msra.mxu0 0.0
    %2088 = vmatprep.subr.mxu0 0.0
    %2089 = vmatpush1.msra.mxu0 0.0
    %2090 = vmatprep.subr.mxu0 0.0
    %2091 = vmatpush1.msra.mxu0 0.0
    %2092 = vmatprep.subr.mxu0 0.0
    %2093 = vmatpush1.msra.mxu0 0.0
    %2094 = vmatprep.subr.mxu0 0.0
    %2095 = vmatpush1.msra.mxu0 0.0
    %2096 = vmatprep.subr.mxu0 0.0
    %2097 = vmatpush1.msra.mxu0 0.0
    %2098 = vmatprep.subr.mxu0 0.0
    %2099 = vmatpush1.msra.mxu0 0.0
    %2100 = vmatprep.subr.mxu0 0.0
    %2101 = vmatpush1.msra.mxu0 0.0
    %2102 = vmatprep.subr.mxu0 0.0
    %2103 = vmatpush1.msra.mxu0 0.0
    %2104 = vmatprep.mubr.f32.mxu0 0.0
    %2105 = vmatmul.mubr.f32.gmra.mrb[0].mxu0 %v2035
    %v2106 = vpop.f32.mrb[0].mxu0
    %v2107 = vadd.f32 0.0, %v2106
    %v2108 = vpop.f32.mrb[0].mxu0
    %2109 = vdwg.mxu0
    %v2110 = vadd.f32 %v2030, %v2107
    %2111 = vst [vmem:[#allocation2] sm:$0xff] %v2110
    // Predicated region
    $region94: #{tpu_custom_call.1} parent=1 // pred_check
      _
    $region95: #{tpu_custom_call.1} parent=1 // pred_check_branch
      %2113 = sbr.rel (0) target = $region97
    $region96: #{tpu_custom_call.1} parent=1 // pred_region
      %s2115 = ssub.s32 128, 128
      %2116 = vsyncadd [#allocation3], %s2115
      %s2118 = sshll.u32 [#allocation2], 4
      %s2119 = int_to_ptr.vmem [resolvable:$true] %s2118
      %2121 = dma.vmem_to_hbm [thread:$0]  %s2119, 128, %s23, [#allocation3]
    $region97: #{tpu_custom_call.1} parent=1 // pred_fallthru
      _
    // Predicated region
    $region98: #{tpu_custom_call.1} parent=1 // pred_check
      _
    $region99: #{tpu_custom_call.1} parent=1 // pred_check_branch
      %2123 = sbr.rel (0) target = $region101
    $region100: #{tpu_custom_call.1} parent=1 // pred_region
      %2124 = dma.done [#allocation3], 128
    $region101: #{tpu_custom_call.1} parent=1 // pred_fallthru
      _
    %2125 = vsyncpa [#allocation3], 1

</llo_original>
